<compile_context>
chip_gen: v7x
topology: tpu7x:2x2x1
jax: 0.10.0
libtpu: 0.0.40
codegen_flags: <defaults>
</compile_context>

<pallas_src>
import math

import jax
import jax.numpy as jnp
from jax import lax
from jax.experimental import pallas as pl
from jax.experimental.pallas import tpu as pltpu

KSIZE = 11
SIGMA = 1.5
L = 2.0
K1 = 1e-4
K2 = 1e-3
C1 = (K1 * L) ** 2
C2 = (K2 * L) ** 2
ALPHA = 0.5

# Output-column chunk width of the banded matmuls (contraction length is
# BAND_TILE + KSIZE - 1). 256 matches the v6e/v7x MXU width; 128 can be a bit
# better on v5e's 4x128^2 MXU.
BAND_TILE = 256

# Deterministic 1-D gaussian taps (Python constants).
_g = [math.exp(-((x - KSIZE // 2) ** 2) / (2.0 * SIGMA ** 2)) for x in range(KSIZE)]
_gsum = sum(_g)
G = [v / _gsum for v in _g]


def _band_matrix(cols):
    """(cols + K - 1, cols) Toeplitz band B with B[a, b] = g[a - b].

    For any window offset c0:  (X[:, c0:c0+cols+K-1] @ B)[:, b]
      = sum_k g[k] * X[:, c0 + b + k]  == 'valid' 1-D gaussian conv at col c0+b.
    The band is shift-invariant, so ONE small matrix serves every chunk.
    """
    g = jnp.asarray(G, jnp.float32)
    a = jnp.arange(cols + KSIZE - 1)[:, None]
    b = jnp.arange(cols)[None, :]
    d = a - b
    band = jnp.where((d >= 0) & (d < KSIZE), g[jnp.clip(d, 0, KSIZE - 1)], 0.0)
    return band.astype(jnp.float32)


def _band_conv_lastdim(v, band, out_len):
    """'valid' 1-D gaussian conv along the last dim of rank-3 `v` via banded matmuls.

    v: (A, B, L) -> (A, B, out_len), out_len = L - KSIZE + 1.  Each chunk is a
    single flattened (A*B, chunk+K-1) x (chunk+K-1, chunk) MXU matmul; the
    (K-1)-element halo keeps chunks independent (no cross-chunk accumulation).
    """
    A, Bd, Lin = v.shape
    v2 = v.reshape(A * Bd, Lin)
    cw = band.shape[1]
    n_chunks = -(-out_len // cw)
    outs = []
    for j in range(n_chunks):
        c0 = j * cw
        w_out = min(cw, out_len - c0)
        w_in = w_out + KSIZE - 1
        outs.append(lax.dot_general(
            v2[:, c0:c0 + w_in], band[:w_in, :w_out],
            dimension_numbers=(((1,), (0,)), ((), ())),
            preferred_element_type=jnp.float32))
    out2 = outs[0] if n_chunks == 1 else jnp.concatenate(outs, axis=-1)
    return out2.reshape(A, Bd, out_len)


def _mixed_loss_kernel(gw_ref, gh_ref, pred_ref, targ_ref, ssim_out_ref, l1_out_ref):
    p = pred_ref[...].astype(jnp.float32)     # (P, H, W)
    t = targ_ref[...].astype(jnp.float32)
    gw = gw_ref[...]                          # (CW + K - 1, CW)  f32, resident in VMEM
    gh = gh_ref[...]                          # (CH + K - 1, CH)  f32, resident in VMEM

    P, H, W = p.shape
    Ho = H - KSIZE + 1
    Wo = W - KSIZE + 1

    # One matmul pair convolves all five SSIM operands at once (M = 5*P*H).
    # NOTE: keep everything f32 — bf16 operands would break the E[x^2] - mu^2
    # variance cancellation past the 2e-4 tolerance.
    x = jnp.concatenate([p, t, p * p, t * t, p * t], axis=0)      # (5P, H, W)

    t1 = _band_conv_lastdim(x, gw, Wo)                            # (5P, H, Wo)   lane pass
    t1t = jnp.swapaxes(t1, 1, 2)                                  # (5P, Wo, H)   XLU transpose
    conv = _band_conv_lastdim(t1t, gh, Ho)                        # (5P, Wo, Ho)  sublane pass
    # Orientation is (Wo, Ho) instead of (Ho, Wo); irrelevant — map is reduced.

    mu0 = conv[0 * P:1 * P]
    mu1 = conv[1 * P:2 * P]
    e00 = conv[2 * P:3 * P]
    e11 = conv[3 * P:4 * P]
    e01 = conv[4 * P:5 * P]

    mu0_sq = mu0 * mu0
    mu1_sq = mu1 * mu1
    mu01 = mu0 * mu1
    var0 = e00 - mu0_sq
    var1 = e11 - mu1_sq
    covar = e01 - mu01

    num = (2.0 * mu01 + C1) * (2.0 * covar + C2)
    den = (mu0_sq + mu1_sq + C1) * (var0 + var1 + C2)
    # EUP approx reciprocal + one Newton step: ~full-divide accuracy, off the VALU.
    r = pl.reciprocal(den, approx=True)
    r = r * (2.0 - den * r)
    ssim_loss_map = 1.0 - num * r

    ssim_s = jnp.sum(ssim_loss_map)
    l1_s = jnp.sum(jnp.abs(p - t))

    # Independent per-step partial sums (no cross-grid RMW) -> grid is "parallel".
    ssim_out_ref[...] = jnp.zeros_like(ssim_out_ref) + ssim_s
    l1_out_ref[...] = jnp.zeros_like(l1_out_ref) + l1_s


def _round_up(x, m):
    return -(-x // m) * m


def _vmem_capacity_bytes():
    try:
        cap = int(pltpu.get_tpu_info().vmem_capacity_bytes)
        if cap > 0:
            return cap
    except Exception:
        pass
    return 64 * 2 ** 20      # conservative fallback (v7x per-core VMEM)


def _per_plane_bytes(H, W, Ho, Wo, itemsize):
    """Approximate (8,128)-padded VMEM footprint of one pred/target plane pair."""
    Hs = _round_up(H, 8)       # H on sublanes
    Wl = _round_up(W, 128)     # W on lanes
    Wol = _round_up(Wo, 128)   # Wo on lanes (lane-pass output)
    Wos = _round_up(Wo, 8)     # Wo on sublanes (after transpose)
    Hl = _round_up(H, 128)     # H on lanes (after transpose)
    Hol = _round_up(Ho, 128)   # Ho on lanes (final conv output)
    return (
        2 * 2 * Hs * Wl * itemsize      # pred/target blocks, double-buffered DMA
        + 7 * Hs * Wl * 4               # f32 casts + 5-operand stack
        + 5 * Hs * Wol * 4              # lane-pass result
        + 5 * Wos * Hl * 4              # transposed copy
        + 12 * Wos * Hol * 4            # conv outputs + SSIM elementwise chain
    )


def _choose_planes(n, pmax):
    """Largest divisor of n within pmax, preferring >= 3 grid steps (pipeline /
    DMA hiding) and an even step count (v7x megacore load balance)."""
    pmax = max(1, pmax)
    best_key, best_d = None, 1
    for d in range(1, n + 1):
        if n % d or d > pmax:
            continue
        steps = n // d
        key = (steps >= 3, steps % 2 == 0 or steps == 1, d)
        if best_key is None or key > best_key:
            best_key, best_d = key, d
    return best_d


def mixed_pix2pix_loss(pred, target):
    """pred, target: (B, 3, H, W) images in (-1, 1). Returns the scalar mixed loss."""
    B, C, H, W = pred.shape
    assert target.shape == pred.shape, "pred/target shape mismatch"
    assert C == 3, "SSIMLoss kernel is built for 3 channels (groups=3)"
    assert H >= KSIZE and W >= KSIZE, "spatial dims must be >= 11 for the valid 11x11 window"
    Ho, Wo = H - KSIZE + 1, W - KSIZE + 1
    n = B * C
    itemsize = jnp.dtype(pred.dtype).itemsize

    capacity = _vmem_capacity_bytes()
    budget = min(int(capacity * 0.4), 48 * 2 ** 20)   # ~25 MiB on v7x, 48 MiB on v5e/v6e
    per_plane = _per_plane_bytes(H, W, Ho, Wo, itemsize)
    # TODO(synk): for planes whose single-plane footprint alone exceeds the
    # budget (>= ~1.5k x 1.5k on v7x) add H-row strip tiling with a 10-row halo.
    P = _choose_planes(n, budget // per_plane)
    num_steps = n // P

    CW = min(BAND_TILE, Wo)
    CH = min(BAND_TILE, Ho)
    gw_band = _band_matrix(CW)       # (CW + 10, CW)   lane-pass band
    gh_band = _band_matrix(CH)       # (CH + 10, CH)   sublane-pass band

    const_bytes = 2 * 2 * 4 * (_round_up(CW + KSIZE - 1, 8) * _round_up(CW, 128)
                               + _round_up(CH + KSIZE - 1, 8) * _round_up(CH, 128))
    est = P * per_plane + const_bytes + 2 * 2 * 8 * 128 * 4
    vmem_limit = int(min(max(est + (8 << 20), 32 << 20),
                         max(capacity - (8 << 20), 32 << 20)))

    p3 = pred.reshape(n, H, W)       # DMA'd in original dtype; cast to f32 in-kernel
    t3 = target.reshape(n, H, W)

    flops_conv = 2 * 5 * n * (H * Wo * (CW + KSIZE - 1) + Wo * Ho * (CH + KSIZE - 1))
    flops_elem = n * (8 * H * W + 25 * Ho * Wo)
    cost = pl.CostEstimate(
        flops=int(flops_conv + flops_elem),
        transcendentals=int(n * Ho * Wo),           # one approx reciprocal per SSIM pixel
        bytes_accessed=int(2 * n * H * W * itemsize
                           + (gw_band.size + gh_band.size) * 4
                           + 2 * num_steps * 8 * 128 * 4),
    )

    ssim_parts, l1_parts = pl.pallas_call(
        _mixed_loss_kernel,
        grid=(num_steps,),
        in_specs=[
            # Small Toeplitz band constants: constant index_map -> stay resident.
            pl.BlockSpec((CW + KSIZE - 1, CW), lambda i: (0, 0)),
            pl.BlockSpec((CH + KSIZE - 1, CH), lambda i: (0, 0)),
            pl.BlockSpec((P, H, W), lambda i: (i, 0, 0)),   # pred planes
            pl.BlockSpec((P, H, W), lambda i: (i, 0, 0)),   # target planes
        ],
        out_specs=(
            pl.BlockSpec((1, 8, 128), lambda i: (i, 0, 0)),
            pl.BlockSpec((1, 8, 128), lambda i: (i, 0, 0)),
        ),
        out_shape=(
            jax.ShapeDtypeStruct((num_steps, 8, 128), jnp.float32),
            jax.ShapeDtypeStruct((num_steps, 8, 128), jnp.float32),
        ),
        compiler_params=pltpu.CompilerParams(
            dimension_semantics=("parallel",),   # per-step partials are independent
            vmem_limit_bytes=vmem_limit,
        ),
        cost_estimate=cost,
    )(gw_band, gh_band, p3, t3)

    ssim_mean = jnp.sum(ssim_parts[:, 0, 0]) / (n * Ho * Wo)
    l1_mean = jnp.sum(l1_parts[:, 0, 0]) / (n * H * W)
    return ALPHA * ssim_mean + (1.0 - ALPHA) * l1_mean


def _reference(pred, target):
    """Pure-JAX reference mirroring the PyTorch module (full 11x11 depthwise conv)."""
    g = jnp.asarray(G, dtype=jnp.float32)
    window = jnp.outer(g, g)
    kernel = jnp.tile(window[None, None], (3, 1, 1, 1))  # (3,1,11,11) OIHW, groups=3

    def conv(x):
        return jax.lax.conv_general_dilated(
            x, kernel, window_strides=(1, 1), padding="VALID",
            dimension_numbers=("NCHW", "OIHW", "NCHW"), feature_group_count=3)

    p = pred.astype(jnp.float32)
    t = target.astype(jnp.float32)
    mu0, mu1 = conv(p), conv(t)
    mu0_sq, mu1_sq = mu0 * mu0, mu1 * mu1
    var0 = conv(p * p) - mu0_sq
    var1 = conv(t * t) - mu1_sq
    covar = conv(p * t) - mu0 * mu1
    num = (2.0 * mu0 * mu1 + C1) * (2.0 * covar + C2)
    den = (mu0_sq + mu1_sq + C1) * (var0 + var1 + C2)
    ssim_loss = jnp.mean(1.0 - num / den)
    l1_loss = jnp.mean(jnp.abs(p - t))
    return ALPHA * ssim_loss + (1.0 - ALPHA) * l1_loss


if __name__ == "__main__":
    key = jax.random.PRNGKey(0)
    k0, k1 = jax.random.split(key)
    B, C, H, W = 2, 3, 24, 24  # H, W must be >= 11 for the valid 11x11 window
    pred = jax.random.uniform(k0, (B, C, H, W), jnp.float32, minval=-1.0, maxval=1.0)
    target = jax.random.uniform(k1, (B, C, H, W), jnp.float32, minval=-1.0, maxval=1.0)

    loss = jax.block_until_ready(mixed_pix2pix_loss(pred, target))
    ref = jax.block_until_ready(_reference(pred, target))

    assert jnp.isfinite(loss), "kernel produced non-finite loss"
    assert abs(float(loss) - float(ref)) < 2e-4, (float(loss), float(ref))
    print("KERNEL_OK")
</pallas_src>

<mosaic_0001>
module attributes {stable_mosaic.version = 11 : i64} {
  func.func @_mixed_loss_kernel(%arg0: i32, %arg1: memref<24x14xf32, #tpu.memory_space<vmem>>, %arg2: memref<24x14xf32, #tpu.memory_space<vmem>>, %arg3: memref<1x24x24xf32, #tpu.memory_space<vmem>>, %arg4: memref<1x24x24xf32, #tpu.memory_space<vmem>>, %arg5: memref<1x8x128xf32, #tpu.memory_space<vmem>>, %arg6: memref<1x8x128xf32, #tpu.memory_space<vmem>>) attributes {dimension_semantics = [#tpu.dimension_semantics<parallel>], iteration_bounds = array<i64: 6>, scalar_prefetch = 0 : i64, scratch_operands = 0 : i64, tpu.core_type = #tpu.core_type<tc>, window_params = [{pipeline_mode = #tpu.pipeline_mode<synchronous>, transform_indices = @transform_0, window_bounds = array<i64: 24, 14>}, {pipeline_mode = #tpu.pipeline_mode<synchronous>, transform_indices = @transform_1, window_bounds = array<i64: 24, 14>}, {transform_indices = @transform_2, window_bounds = array<i64: 1, 24, 24>}, {transform_indices = @transform_3, window_bounds = array<i64: 1, 24, 24>}, {transform_indices = @transform_4, window_bounds = array<i64: 1, 8, 128>}, {transform_indices = @transform_5, window_bounds = array<i64: 1, 8, 128>}]} {
    %c0 = arith.constant 0 : index
    %c0_0 = arith.constant 0 : index
    %c0_1 = arith.constant 0 : index
    %0 = vector.load %arg3[%c0, %c0_0, %c0_1] : memref<1x24x24xf32, #tpu.memory_space<vmem>>, vector<1x24x24xf32>
    %c0_2 = arith.constant 0 : index
    %c0_3 = arith.constant 0 : index
    %c0_4 = arith.constant 0 : index
    %1 = vector.load %arg4[%c0_2, %c0_3, %c0_4] : memref<1x24x24xf32, #tpu.memory_space<vmem>>, vector<1x24x24xf32>
    %c0_5 = arith.constant 0 : index
    %c0_6 = arith.constant 0 : index
    %2 = vector.load %arg1[%c0_5, %c0_6] : memref<24x14xf32, #tpu.memory_space<vmem>>, vector<24x14xf32>
    %c0_7 = arith.constant 0 : index
    %c0_8 = arith.constant 0 : index
    %3 = vector.load %arg2[%c0_7, %c0_8] : memref<24x14xf32, #tpu.memory_space<vmem>>, vector<24x14xf32>
    %4 = arith.mulf %0, %0 : vector<1x24x24xf32>
    %5 = arith.mulf %1, %1 : vector<1x24x24xf32>
    %6 = arith.mulf %0, %1 : vector<1x24x24xf32>
    %7 = tpu.concatenate %0, %1, %4, %5, %6 in 0 : vector<1x24x24xf32>, vector<1x24x24xf32>, vector<1x24x24xf32>, vector<1x24x24xf32>, vector<1x24x24xf32> -> vector<5x24x24xf32>
    %8 = vector.shape_cast %7 : vector<5x24x24xf32> to vector<120x24xf32>
    %cst = arith.constant dense<0.000000e+00> : vector<120x14xf32>
    %9 = tpu.matmul %8, %2, %cst {dimension_numbers = #tpu.dot_dimension_numbers<[1], [0], [0], [1], [0, 0, 1, 1], [], []>} : vector<120x24xf32>, vector<24x14xf32>, vector<120x14xf32> -> vector<120x14xf32>
    %10 = vector.shape_cast %9 : vector<120x14xf32> to vector<5x24x14xf32>
    %11 = tpu.transpose %10, [0, 2, 1] : vector<5x24x14xf32> -> vector<5x14x24xf32>
    %12 = vector.shape_cast %11 : vector<5x14x24xf32> to vector<70x24xf32>
    %cst_9 = arith.constant dense<0.000000e+00> : vector<70x14xf32>
    %13 = tpu.matmul %12, %3, %cst_9 {dimension_numbers = #tpu.dot_dimension_numbers<[1], [0], [0], [1], [0, 0, 1, 1], [], []>} : vector<70x24xf32>, vector<24x14xf32>, vector<70x14xf32> -> vector<70x14xf32>
    %14 = vector.shape_cast %13 : vector<70x14xf32> to vector<5x14x14xf32>
    %15 = vector.extract_strided_slice %14 {offsets = [0, 0, 0], sizes = [1, 14, 14], strides = [1, 1, 1]} : vector<5x14x14xf32> to vector<1x14x14xf32>
    %16 = vector.extract_strided_slice %14 {offsets = [1, 0, 0], sizes = [1, 14, 14], strides = [1, 1, 1]} : vector<5x14x14xf32> to vector<1x14x14xf32>
    %17 = vector.extract_strided_slice %14 {offsets = [2, 0, 0], sizes = [1, 14, 14], strides = [1, 1, 1]} : vector<5x14x14xf32> to vector<1x14x14xf32>
    %18 = vector.extract_strided_slice %14 {offsets = [3, 0, 0], sizes = [1, 14, 14], strides = [1, 1, 1]} : vector<5x14x14xf32> to vector<1x14x14xf32>
    %19 = vector.extract_strided_slice %14 {offsets = [4, 0, 0], sizes = [1, 14, 14], strides = [1, 1, 1]} : vector<5x14x14xf32> to vector<1x14x14xf32>
    %20 = arith.mulf %15, %15 : vector<1x14x14xf32>
    %21 = arith.mulf %16, %16 : vector<1x14x14xf32>
    %22 = arith.mulf %15, %16 : vector<1x14x14xf32>
    %23 = arith.subf %17, %20 : vector<1x14x14xf32>
    %24 = arith.subf %18, %21 : vector<1x14x14xf32>
    %25 = arith.subf %19, %22 : vector<1x14x14xf32>
    %cst_10 = arith.constant 2.000000e+00 : f32
    %26 = vector.broadcast %cst_10 : f32 to vector<1x14x14xf32>
    %27 = arith.mulf %26, %22 : vector<1x14x14xf32>
    %cst_11 = arith.constant 4.000000e-08 : f32
    %28 = vector.broadcast %cst_11 : f32 to vector<1x14x14xf32>
    %29 = arith.addf %27, %28 : vector<1x14x14xf32>
    %cst_12 = arith.constant 2.000000e+00 : f32
    %30 = vector.broadcast %cst_12 : f32 to vector<1x14x14xf32>
    %31 = arith.mulf %30, %25 : vector<1x14x14xf32>
    %cst_13 = arith.constant 4.000000e-06 : f32
    %32 = vector.broadcast %cst_13 : f32 to vector<1x14x14xf32>
    %33 = arith.addf %31, %32 : vector<1x14x14xf32>
    %34 = arith.mulf %29, %33 : vector<1x14x14xf32>
    %35 = arith.addf %20, %21 : vector<1x14x14xf32>
    %cst_14 = arith.constant 4.000000e-08 : f32
    %36 = vector.broadcast %cst_14 : f32 to vector<1x14x14xf32>
    %37 = arith.addf %35, %36 : vector<1x14x14xf32>
    %38 = arith.addf %23, %24 : vector<1x14x14xf32>
    %cst_15 = arith.constant 4.000000e-06 : f32
    %39 = vector.broadcast %cst_15 : f32 to vector<1x14x14xf32>
    %40 = arith.addf %38, %39 : vector<1x14x14xf32>
    %41 = arith.mulf %37, %40 : vector<1x14x14xf32>
    %42 = tpu.reciprocal %41 {approx = true} : vector<1x14x14xf32> -> vector<1x14x14xf32>
    %43 = arith.mulf %41, %42 : vector<1x14x14xf32>
    %cst_16 = arith.constant 2.000000e+00 : f32
    %44 = vector.broadcast %cst_16 : f32 to vector<1x14x14xf32>
    %45 = arith.subf %44, %43 : vector<1x14x14xf32>
    %46 = arith.mulf %42, %45 : vector<1x14x14xf32>
    %47 = arith.mulf %34, %46 : vector<1x14x14xf32>
    %cst_17 = arith.constant 1.000000e+00 : f32
    %48 = vector.broadcast %cst_17 : f32 to vector<1x14x14xf32>
    %49 = arith.subf %48, %47 : vector<1x14x14xf32>
    %50 = vector.shape_cast %49 : vector<1x14x14xf32> to vector<1x1x14x14xf32>
    %cst_18 = arith.constant dense<0.000000e+00> : vector<1xf32>
    %51 = vector.multi_reduction <add>, %50, %cst_18 [1, 2, 3] : vector<1x1x14x14xf32> to vector<1xf32>
    %52 = vector.shape_cast %51 : vector<1xf32> to vector<1x1x1x1xf32>
    %53 = vector.extract %52[0, 0, 0, 0] : f32 from vector<1x1x1x1xf32>
    %54 = arith.subf %0, %1 : vector<1x24x24xf32>
    %55 = math.absf %54 : vector<1x24x24xf32>
    %56 = vector.shape_cast %55 : vector<1x24x24xf32> to vector<1x1x24x24xf32>
    %cst_19 = arith.constant dense<0.000000e+00> : vector<1xf32>
    %57 = vector.multi_reduction <add>, %56, %cst_19 [1, 2, 3] : vector<1x1x24x24xf32> to vector<1xf32>
    %58 = vector.shape_cast %57 : vector<1xf32> to vector<1x1x1x1xf32>
    %59 = vector.extract %58[0, 0, 0, 0] : f32 from vector<1x1x1x1xf32>
    %cst_20 = arith.constant 0.000000e+00 : f32
    %60 = vector.broadcast %cst_20 : f32 to vector<1x8x128xf32>
    %61 = vector.broadcast %53 : f32 to vector<1x8x128xf32>
    %62 = arith.addf %60, %61 : vector<1x8x128xf32>
    %c0_21 = arith.constant 0 : index
    %c0_22 = arith.constant 0 : index
    %c0_23 = arith.constant 0 : index
    %63 = vector.load %arg5[%c0_21, %c0_22, %c0_23] : memref<1x8x128xf32, #tpu.memory_space<vmem>>, vector<1x8x128xf32>
    tpu.vector_store %arg5[%c0_21, %c0_22, %c0_23], %62 {strides = array<i32>} : memref<1x8x128xf32, #tpu.memory_space<vmem>>, vector<1x8x128xf32>,
    %cst_24 = arith.constant 0.000000e+00 : f32
    %64 = vector.broadcast %cst_24 : f32 to vector<1x8x128xf32>
    %65 = vector.broadcast %59 : f32 to vector<1x8x128xf32>
    %66 = arith.addf %64, %65 : vector<1x8x128xf32>
    %c0_25 = arith.constant 0 : index
    %c0_26 = arith.constant 0 : index
    %c0_27 = arith.constant 0 : index
    %67 = vector.load %arg6[%c0_25, %c0_26, %c0_27] : memref<1x8x128xf32, #tpu.memory_space<vmem>>, vector<1x8x128xf32>
    tpu.vector_store %arg6[%c0_25, %c0_26, %c0_27], %66 {strides = array<i32>} : memref<1x8x128xf32, #tpu.memory_space<vmem>>, vector<1x8x128xf32>,
    return
  }
  func.func @transform_0(%arg0: i32) -> (i32, i32) {
    %c0_i32 = arith.constant 0 : i32
    %c0_i32_0 = arith.constant 0 : i32
    %c0_i32_1 = arith.constant 0 : i32
    return %c0_i32, %c0_i32_0 : i32, i32
  }
  func.func @transform_1(%arg0: i32) -> (i32, i32) {
    %c0_i32 = arith.constant 0 : i32
    %c0_i32_0 = arith.constant 0 : i32
    %c0_i32_1 = arith.constant 0 : i32
    return %c0_i32, %c0_i32_0 : i32, i32
  }
  func.func @transform_2(%arg0: i32) -> (i32, i32, i32) {
    %c0_i32 = arith.constant 0 : i32
    %c0_i32_0 = arith.constant 0 : i32
    %c0_i32_1 = arith.constant 0 : i32
    return %arg0, %c0_i32, %c0_i32_0 : i32, i32, i32
  }
  func.func @transform_3(%arg0: i32) -> (i32, i32, i32) {
    %c0_i32 = arith.constant 0 : i32
    %c0_i32_0 = arith.constant 0 : i32
    %c0_i32_1 = arith.constant 0 : i32
    return %arg0, %c0_i32, %c0_i32_0 : i32, i32, i32
  }
  func.func @transform_4(%arg0: i32) -> (i32, i32, i32) {
    %c0_i32 = arith.constant 0 : i32
    %c0_i32_0 = arith.constant 0 : i32
    %c0_i32_1 = arith.constant 0 : i32
    return %arg0, %c0_i32, %c0_i32_0 : i32, i32, i32
  }
  func.func @transform_5(%arg0: i32) -> (i32, i32, i32) {
    %c0_i32 = arith.constant 0 : i32
    %c0_i32_0 = arith.constant 0 : i32
    %c0_i32_1 = arith.constant 0 : i32
    return %arg0, %c0_i32, %c0_i32_0 : i32, i32, i32
  }
}

</mosaic_0001>

<llo_original>
// kernel: tpu_custom_call.1
$region0: #{tpu_custom_call.1}
  #allocation0 [shape = 'u32[]', space=smem, size = 0x4, offset = 0x4, fixed_abs, tag = 'smem constant byte address 0x4 - core index']
  #allocation1 [shape = 'u32[144,128]{1,0:T(1,128)}', space=vmem, size = 0x12000, scoped, tag = 'internal scratch']
  %s0 = inlined_call_operand.vmem [shape: f32[24,14], index: 0, kind: input, shape index: {}]
  %s1 = inlined_call_operand.vmem [shape: f32[24,14], index: 1, kind: input, shape index: {}]
  %s2 = inlined_call_operand.hbm [shape: f32[6,24,24], index: 2, kind: input, shape index: {}]
  %s3 = inlined_call_operand.hbm [shape: f32[6,24,24], index: 3, kind: input, shape index: {}]
  %s4 = inlined_call_operand.hbm [shape: f32[6,8,128], index: 4, kind: output, shape index: {0}]
  %s5 = inlined_call_operand.hbm [shape: f32[6,8,128], index: 5, kind: output, shape index: {1}]
  %6 = xla_tuple %s4, %s5
  %s7 = sld [smem:[#allocation0]]
  $region65: #{tpu_custom_call.1} parent=0
    _
  %s9 = ssub.s32 1, %s7
  %s10 = scalar_select 0, %s9, %s7
  $region1: #{tpu_custom_call.1} parent=0
    #allocation2 [shape = 'u8[24576]{0}', space=vmem, size = 0x6000, scoped, tag = 'input window, operand 2']
    #allocation3 [shape = 's32[2]{0}', space=sflag, size = 0x8, scoped, tag = 'scoped memory for tpu_custom_call.1']
    #allocation4 [shape = 's32[2]{0}', space=sflag, size = 0x8, scoped, tag = 'scoped memory for tpu_custom_call.1']
    #allocation5 [shape = 'u8[24576]{0}', space=vmem, size = 0x6000, scoped, tag = 'input window, operand 3']
    #allocation6 [shape = 's32[2]{0}', space=sflag, size = 0x8, scoped, tag = 'scoped memory for tpu_custom_call.1']
    #allocation7 [shape = 'u8[8192]{0}', space=vmem, size = 0x2000, scoped, tag = 'output window, operand 0']
    #allocation8 [shape = 'u8[8192]{0}', space=vmem, size = 0x2000, scoped, tag = 'output window, operand 1']
    #allocation9 [shape = 's32[2]{0}', space=sflag, size = 0x8, scoped, tag = 'scoped memory for tpu_custom_call.1']
    %11 = vsyncpa [#allocation3], 0
    %s12 = scalar_lea.sflag [#allocation3], 1
    %13 = vsyncpa %s12, 0
    %14 = vsyncpa [#allocation6], 0
    %s15 = scalar_lea.sflag [#allocation6], 1
    %16 = vsyncpa %s15, 0
    %17 = vsyncpa [#allocation4], 0
    %s18 = scalar_lea.sflag [#allocation4], 1
    %19 = vsyncpa %s18, 0
    %20 = vsyncpa [#allocation9], 0
    %s21 = scalar_lea.sflag [#allocation9], 1
    %22 = vsyncpa %s21, 0
    loop: start=0, step=1, limit=8
    $region2: #{tpu_custom_call.1} parent=1 // loop_pre_header
      _
    $region3: #{tpu_custom_call.1} parent=1 // loop_header
      %s24 = sphi 0, %s28
      %p25 = scmp.ge.s32.totalorder %s24, 8
      %s32 = sphi 0, %s32
      %s34 = sphi 0, %s32
      %s35 = sphi 0, %s34
      %s49 = sphi 0, %s35
      %s53 = sphi 0, %s53
      %s55 = sphi 0, %s53
      %s56 = sphi 0, %s55
      %s70 = sphi 0, %s56
      %s76 = sphi 0, %s78
      %s79 = sphi 0, %s76
      %s80 = sphi 0, %s79
      %s96 = sphi 0, %s80
      %s102 = sphi 0, %s104
      %s105 = sphi 0, %s102
      %s106 = sphi 0, %s105
      %s122 = sphi 0, %s106
      %s128 = sphi 0, %s130
      %s131 = sphi 0, %s128
      %s132 = sphi 0, %s131
      %s148 = sphi 0, %s132
      %s154 = sphi 0, %s156
      %s157 = sphi 0, %s154
      %s158 = sphi 0, %s157
      %s174 = sphi 0, %s158
    $region4: #{tpu_custom_call.1} parent=1 // loop_header_branch
      %27 = sbr.rel (%p25) target = $region8
    $region5: #{tpu_custom_call.1} parent=1 // loop_body
      %s29 = ssub.s32 %s24, 1
      %s30 = ssub.s32 %s24, 2
      %s31 = sadd.s32 %s24, 1
      %s33 = sadd.s32 %s32, 1
      %p36 = scmp.eq.s32.totalorder %s24, 5
      %p37 = scmp.ne.s32.totalorder %s32, %s34
      %p38 = scmp.eq.s32.totalorder %s24, 0
      %p39 = por %p37, %p38
      %p40 = scmp.ne.s32.totalorder %s32, %s34
      %p41 = scmp.eq.s32.totalorder %s29, 5
      %p42 = por %p40, %p41
      %p43 = scmp.ne.s32.totalorder %s34, %s35
      %p44 = scmp.eq.s32.totalorder %s29, 0
      %p45 = por %p43, %p44
      %p46 = scmp.ne.s32.totalorder %s34, %s35
      %p47 = scmp.eq.s32.totalorder %s30, 5
      %p48 = por %p46, %p47
      %p50 = scmp.ne.s32.totalorder %s35, %s49
      %p51 = scmp.eq.s32.totalorder %s30, 0
      %p52 = por %p50, %p51
      %s54 = sadd.s32 %s53, 1
      %p57 = scmp.eq.s32.totalorder %s24, 5
      %p58 = scmp.ne.s32.totalorder %s53, %s55
      %p59 = scmp.eq.s32.totalorder %s24, 0
      %p60 = por %p58, %p59
      %p61 = scmp.ne.s32.totalorder %s53, %s55
      %p62 = scmp.eq.s32.totalorder %s29, 5
      %p63 = por %p61, %p62
      %p64 = scmp.ne.s32.totalorder %s55, %s56
      %p65 = scmp.eq.s32.totalorder %s29, 0
      %p66 = por %p64, %p65
      %p67 = scmp.ne.s32.totalorder %s55, %s56
      %p68 = scmp.eq.s32.totalorder %s30, 5
      %p69 = por %p67, %p68
      %p71 = scmp.ne.s32.totalorder %s56, %s70
      %p72 = scmp.eq.s32.totalorder %s30, 0
      %p73 = por %p71, %p72
      %s74 = ssub.s32 %s24, %s31
      %p75 = scmp.eq.s32.totalorder %s74, 0
      %s77 = sadd.s32 %s76, 1
      %s78 = scalar_select %p75, %s76, %s77
      %p81 = pneg %p75
      %p82 = scmp.eq.s32.totalorder %s24, 5
      %p83 = por %p81, %p82
      %p84 = scmp.ne.s32.totalorder %s76, %s79
      %p85 = scmp.eq.s32.totalorder %s24, 0
      %p86 = por %p84, %p85
      %p87 = scmp.ne.s32.totalorder %s76, %s79
      %p88 = scmp.eq.s32.totalorder %s29, 5
      %p89 = por %p87, %p88
      %p90 = scmp.ne.s32.totalorder %s79, %s80
      %p91 = scmp.eq.s32.totalorder %s29, 0
      %p92 = por %p90, %p91
      %p93 = scmp.ne.s32.totalorder %s79, %s80
      %p94 = scmp.eq.s32.totalorder %s30, 5
      %p95 = por %p93, %p94
      %p97 = scmp.ne.s32.totalorder %s80, %s96
      %p98 = scmp.eq.s32.totalorder %s30, 0
      %p99 = por %p97, %p98
      %s100 = ssub.s32 %s24, %s31
      %p101 = scmp.eq.s32.totalorder %s100, 0
      %s103 = sadd.s32 %s102, 1
      %s104 = scalar_select %p101, %s102, %s103
      %p107 = pneg %p101
      %p108 = scmp.eq.s32.totalorder %s24, 5
      %p109 = por %p107, %p108
      %p110 = scmp.ne.s32.totalorder %s102, %s105
      %p111 = scmp.eq.s32.totalorder %s24, 0
      %p112 = por %p110, %p111
      %p113 = scmp.ne.s32.totalorder %s102, %s105
      %p114 = scmp.eq.s32.totalorder %s29, 5
      %p115 = por %p113, %p114
      %p116 = scmp.ne.s32.totalorder %s105, %s106
      %p117 = scmp.eq.s32.totalorder %s29, 0
      %p118 = por %p116, %p117
      %p119 = scmp.ne.s32.totalorder %s105, %s106
      %p120 = scmp.eq.s32.totalorder %s30, 5
      %p121 = por %p119, %p120
      %p123 = scmp.ne.s32.totalorder %s106, %s122
      %p124 = scmp.eq.s32.totalorder %s30, 0
      %p125 = por %p123, %p124
      %s126 = ssub.s32 %s24, %s31
      %p127 = scmp.eq.s32.totalorder %s126, 0
      %s129 = sadd.s32 %s128, 1
      %s130 = scalar_select %p127, %s128, %s129
      %p133 = pneg %p127
      %p134 = scmp.eq.s32.totalorder %s24, 5
      %p135 = por %p133, %p134
      %p136 = scmp.ne.s32.totalorder %s128, %s131
      %p137 = scmp.eq.s32.totalorder %s24, 0
      %p138 = por %p136, %p137
      %p139 = scmp.ne.s32.totalorder %s128, %s131
      %p140 = scmp.eq.s32.totalorder %s29, 5
      %p141 = por %p139, %p140
      %p142 = scmp.ne.s32.totalorder %s131, %s132
      %p143 = scmp.eq.s32.totalorder %s29, 0
      %p144 = por %p142, %p143
      %p145 = scmp.ne.s32.totalorder %s131, %s132
      %p146 = scmp.eq.s32.totalorder %s30, 5
      %p147 = por %p145, %p146
      %p149 = scmp.ne.s32.totalorder %s132, %s148
      %p150 = scmp.eq.s32.totalorder %s30, 0
      %p151 = por %p149, %p150
      %s152 = ssub.s32 %s24, %s31
      %p153 = scmp.eq.s32.totalorder %s152, 0
      %s155 = sadd.s32 %s154, 1
      %s156 = scalar_select %p153, %s154, %s155
      %p159 = pneg %p153
      %p160 = scmp.eq.s32.totalorder %s24, 5
      %p161 = por %p159, %p160
      %p162 = scmp.ne.s32.totalorder %s154, %s157
      %p163 = scmp.eq.s32.totalorder %s24, 0
      %p164 = por %p162, %p163
      %p165 = scmp.ne.s32.totalorder %s154, %s157
      %p166 = scmp.eq.s32.totalorder %s29, 5
      %p167 = por %p165, %p166
      %p168 = scmp.ne.s32.totalorder %s157, %s158
      %p169 = scmp.eq.s32.totalorder %s29, 0
      %p170 = por %p168, %p169
      %p171 = scmp.ne.s32.totalorder %s157, %s158
      %p172 = scmp.eq.s32.totalorder %s30, 5
      %p173 = por %p171, %p172
      %p175 = scmp.ne.s32.totalorder %s158, %s174
      %p176 = scmp.eq.s32.totalorder %s30, 0
      %p177 = por %p175, %p176
      %p178 = scmp.le.s32.totalorder 1, %s24
      %p179 = scmp.lt.s32.totalorder %s24, 7
      %p180 = pnand %p178, %p179
      %p181 = pneg %p180
      // Predicated region
      $region9: #{tpu_custom_call.1} parent=5 // pred_check
        _
      $region10: #{tpu_custom_call.1} parent=5 // pred_check_branch
        %183 = sbr.rel (%p180) target = $region12
      $region11: #{tpu_custom_call.1} parent=5 // pred_region
        %s184 = ssub.s32 %s24, 1
        // Predicated region
        $region13: #{tpu_custom_call.1} parent=11 // pred_check
          %p185 = pneg %p45
        $region14: #{tpu_custom_call.1} parent=11 // pred_check_branch
          %187 = sbr.rel (%p185) target = $region16
        $region15: #{tpu_custom_call.1} parent=11 // pred_region
          _
        $region16: #{tpu_custom_call.1} parent=11 // pred_fallthru
          _
        // Predicated region
        $region17: #{tpu_custom_call.1} parent=11 // pred_check
          %p188 = pneg %p66
        $region18: #{tpu_custom_call.1} parent=11 // pred_check_branch
          %190 = sbr.rel (%p188) target = $region20
        $region19: #{tpu_custom_call.1} parent=11 // pred_region
          _
        $region20: #{tpu_custom_call.1} parent=11 // pred_fallthru
          _
      $region12: #{tpu_custom_call.1} parent=5 // pred_fallthru
        _
      %p191 = scmp.lt.s32.totalorder %s24, 6
      // Predicated region
      $region21: #{tpu_custom_call.1} parent=5 // pred_check
        %p192 = pneg %p191
      $region22: #{tpu_custom_call.1} parent=5 // pred_check_branch
        %194 = sbr.rel (%p192) target = $region24
      $region23: #{tpu_custom_call.1} parent=5 // pred_region
        // Predicated region
        $region25: #{tpu_custom_call.1} parent=23 // pred_check
          %p195 = pneg %p86
        $region26: #{tpu_custom_call.1} parent=23 // pred_check_branch
          %197 = sbr.rel (%p195) target = $region28
        $region27: #{tpu_custom_call.1} parent=23 // pred_region
          %s198 = sand.u32 %s76, 1
          %s199 = scalar_lea.sflag [#allocation3], %s198
          %s200 = sand.u32 %s76, 1
          %s201 = smul.addr %s200, 24
          %s202 = scalar_lea.vmem [#allocation2], %s201
          %s204 = ssub.s32 384, 384
          %205 = vsyncadd %s199, %s204
          %s206 = smul.addr %s24, 3
          %s207 = smul.addr %s206, 128
          %s208 = scalar_lea.hbm %s2, %s207
          %s209 = sshll.u32 %s202, 4
          %s210 = int_to_ptr.vmem [resolvable:$true] %s209
          %215 = dma.hbm_to_vmem [thread:$0]  %s208, 384, %s210, %s199, 128, 128, 8
        $region28: #{tpu_custom_call.1} parent=23 // pred_fallthru
          _
        // Predicated region
        $region29: #{tpu_custom_call.1} parent=23 // pred_check
          %p216 = pneg %p112
        $region30: #{tpu_custom_call.1} parent=23 // pred_check_branch
          %218 = sbr.rel (%p216) target = $region32
        $region31: #{tpu_custom_call.1} parent=23 // pred_region
          %s219 = sand.u32 %s102, 1
          %s220 = scalar_lea.sflag [#allocation6], %s219
          %s221 = sand.u32 %s102, 1
          %s222 = smul.addr %s221, 24
          %s223 = scalar_lea.vmem [#allocation5], %s222
          %s225 = ssub.s32 384, 384
          %226 = vsyncadd %s220, %s225
          %s227 = smul.addr %s24, 3
          %s228 = smul.addr %s227, 128
          %s229 = scalar_lea.hbm %s3, %s228
          %s230 = sshll.u32 %s223, 4
          %s231 = int_to_ptr.vmem [resolvable:$true] %s230
          %236 = dma.hbm_to_vmem [thread:$0]  %s229, 384, %s231, %s220, 128, 128, 8
        $region32: #{tpu_custom_call.1} parent=23 // pred_fallthru
          _
      $region24: #{tpu_custom_call.1} parent=5 // pred_fallthru
        _
      %p237 = scmp.le.s32.totalorder 1, %s24
      %p238 = scmp.lt.s32.totalorder %s24, 7
      %p239 = pnand %p237, %p238
      %p240 = pneg %p239
      // Predicated region
      $region33: #{tpu_custom_call.1} parent=5 // pred_check
        _
      $region34: #{tpu_custom_call.1} parent=5 // pred_check_branch
        %242 = sbr.rel (%p239) target = $region36
      $region35: #{tpu_custom_call.1} parent=5 // pred_region
        %s243 = ssub.s32 %s24, 1
        %s244 = sand.u32 %s79, 1
        %s245 = scalar_lea.sflag [#allocation3], %s244
        %s246 = sand.u32 %s79, 1
        %s247 = smul.addr %s246, 24
        %s248 = scalar_lea.vmem [#allocation2], %s247
        // Predicated region
        $region37: #{tpu_custom_call.1} parent=35 // pred_check
          %p249 = pneg %p92
        $region38: #{tpu_custom_call.1} parent=35 // pred_check_branch
          %251 = sbr.rel (%p249) target = $region40
        $region39: #{tpu_custom_call.1} parent=35 // pred_region
          %252 = dma.done %s245, 384
        $region40: #{tpu_custom_call.1} parent=35 // pred_fallthru
          _
        %s253 = sand.u32 %s105, 1
        %s254 = scalar_lea.sflag [#allocation6], %s253
        %s255 = sand.u32 %s105, 1
        %s256 = smul.addr %s255, 24
        %s257 = scalar_lea.vmem [#allocation5], %s256
        // Predicated region
        $region41: #{tpu_custom_call.1} parent=35 // pred_check
          %p258 = pneg %p118
        $region42: #{tpu_custom_call.1} parent=35 // pred_check_branch
          %260 = sbr.rel (%p258) target = $region44
        $region43: #{tpu_custom_call.1} parent=35 // pred_region
          %261 = dma.done %s254, 384
        $region44: #{tpu_custom_call.1} parent=35 // pred_fallthru
          _
        %p262 = pneg %p45
        %p263 = pneg %p42
        %p264 = pneg %p66
        %p265 = pneg %p63
        %s266 = sand.u32 %s79, 1
        %s267 = scalar_lea.sflag [#allocation3], %s266
        %s268 = sand.u32 %s79, 1
        %s269 = smul.addr %s268, 24
        %s270 = scalar_lea.vmem [#allocation2], %s269
        %p271 = pneg %p92
        %p272 = pneg %p89
        %s273 = sand.u32 %s105, 1
        %s274 = scalar_lea.sflag [#allocation6], %s273
        %s275 = sand.u32 %s105, 1
        %s276 = smul.addr %s275, 24
        %s277 = scalar_lea.vmem [#allocation5], %s276
        %p278 = pneg %p118
        %p279 = pneg %p115
        %p280 = pneg %p144
        %p281 = pneg %p141
        %s282 = sand.u32 %s131, 1
        %s283 = scalar_lea.sflag [#allocation4], %s282
        %s284 = sand.u32 %s131, 1
        %s285 = smul.addr %s284, 8
        %s286 = scalar_lea.vmem [#allocation7], %s285
        %p287 = pneg %p170
        %p288 = pneg %p167
        %s289 = sand.u32 %s157, 1
        %s290 = scalar_lea.sflag [#allocation9], %s289
        %s291 = sand.u32 %s157, 1
        %s292 = smul.addr %s291, 8
        %s293 = scalar_lea.vmem [#allocation8], %s292
        %v294 = vld [vmem:[%s248] sm:$0xff]
        %v295 = vld [vmem:[%s248 + $0x8] sm:$0xff]
        %v296 = vld [vmem:[%s248 + $0x10] sm:$0xff]
        %v297 = vld [vmem:[%s257] sm:$0xff]
        %v298 = vld [vmem:[%s257 + $0x8] sm:$0xff]
        %v299 = vld [vmem:[%s257 + $0x10] sm:$0xff]
        %v300 = vld [vmem:[%s0] sm:$0xff]
        %v301 = vld [vmem:[%s0 + $0x8] sm:$0xff]
        %v302 = vld [vmem:[%s0 + $0x10] sm:$0xff]
        %v303 = vld [vmem:[%s1] sm:$0xff]
        %v304 = vld [vmem:[%s1 + $0x8] sm:$0xff]
        %v305 = vld [vmem:[%s1 + $0x10] sm:$0xff]
        %v306 = vmul.f32 %v294, %v294
        %v307 = vmul.f32 %v295, %v295
        %v308 = vmul.f32 %v296, %v296
        %v309 = vmul.f32 %v297, %v297
        %v310 = vmul.f32 %v298, %v298
        %v311 = vmul.f32 %v299, %v299
        %v312 = vmul.f32 %v294, %v297
        %v313 = vmul.f32 %v295, %v298
        %v314 = vmul.f32 %v296, %v299
        %vm315 = vcmask 195584
        %v317 = vsel %vm315, %v294, 0
        %v320 = vsel %vm315, %v295, 0
        %v323 = vsel %vm315, %v296, 0
        %v326 = vsel %vm315, %v297, 0
        %v329 = vsel %vm315, %v298, 0
        %v332 = vsel %vm315, %v299, 0
        %v335 = vsel %vm315, %v306, 0
        %v338 = vsel %vm315, %v307, 0
        %v341 = vsel %vm315, %v308, 0
        %v344 = vsel %vm315, %v309, 0
        %v347 = vsel %vm315, %v310, 0
        %v350 = vsel %vm315, %v311, 0
        %v353 = vsel %vm315, %v312, 0
        %v356 = vsel %vm315, %v313, 0
        %v359 = vsel %vm315, %v314, 0
        %361 = vmatprep.subr.mxu0 0.0
        %362 = vmatpush1.msra.mxu0 %v300
        %363 = vmatprep.subr.mxu0 0.0
        %364 = vmatpush1.msra.mxu0 %v301
        %365 = vmatprep.subr.mxu0 0.0
        %366 = vmatpush1.msra.mxu0 %v302
        %367 = vmatprep.subr.mxu0 0.0
        %368 = vmatpush1.msra.mxu0 0.0
        %369 = vmatprep.subr.mxu0 0.0
        %370 = vmatpush1.msra.mxu0 0.0
        %371 = vmatprep.subr.mxu0 0.0
        %372 = vmatpush1.msra.mxu0 0.0
        %373 = vmatprep.subr.mxu0 0.0
        %374 = vmatpush1.msra.mxu0 0.0
        %375 = vmatprep.subr.mxu0 0.0
        %376 = vmatpush1.msra.mxu0 0.0
        %377 = vmatprep.subr.mxu0 0.0
        %378 = vmatpush1.msra.mxu0 0.0
        %379 = vmatprep.subr.mxu0 0.0
        %380 = vmatpush1.msra.mxu0 0.0
        %381 = vmatprep.subr.mxu0 0.0
        %382 = vmatpush1.msra.mxu0 0.0
        %383 = vmatprep.subr.mxu0 0.0
        %384 = vmatpush1.msra.mxu0 0.0
        %385 = vmatprep.subr.mxu0 0.0
        %386 = vmatpush1.msra.mxu0 0.0
        %387 = vmatprep.subr.mxu0 0.0
        %388 = vmatpush1.msra.mxu0 0.0
        %389 = vmatprep.subr.mxu0 0.0
        %390 = vmatpush1.msra.mxu0 0.0
        %391 = vmatprep.subr.mxu0 0.0
        %392 = vmatpush1.msra.mxu0 0.0
        %393 = vmatprep.subr.mxu0 0.0
        %394 = vmatpush1.msra.mxu0 0.0
        %395 = vmatprep.subr.mxu0 0.0
        %396 = vmatpush1.msra.mxu0 0.0
        %397 = vmatprep.subr.mxu0 0.0
        %398 = vmatpush1.msra.mxu0 0.0
        %399 = vmatprep.subr.mxu0 0.0
        %400 = vmatpush1.msra.mxu0 0.0
        %401 = vmatprep.subr.mxu0 0.0
        %402 = vmatpush1.msra.mxu0 0.0
        %403 = vmatprep.subr.mxu0 0.0
        %404 = vmatpush1.msra.mxu0 0.0
        %405 = vmatprep.subr.mxu0 0.0
        %406 = vmatpush1.msra.mxu0 0.0
        %407 = vmatprep.subr.mxu0 0.0
        %408 = vmatpush1.msra.mxu0 0.0
        %409 = vmatprep.subr.mxu0 0.0
        %410 = vmatpush1.msra.mxu0 0.0
        %411 = vmatprep.subr.mxu0 0.0
        %412 = vmatpush1.msra.mxu0 0.0
        %413 = vmatprep.subr.mxu0 0.0
        %414 = vmatpush1.msra.mxu0 0.0
        %415 = vmatprep.subr.mxu0 0.0
        %416 = vmatpush1.msra.mxu0 0.0
        %417 = vmatprep.subr.mxu0 0.0
        %418 = vmatpush1.msra.mxu0 0.0
        %419 = vmatprep.subr.mxu0 0.0
        %420 = vmatpush1.msra.mxu0 0.0
        %421 = vmatprep.subr.mxu0 0.0
        %422 = vmatpush1.msra.mxu0 0.0
        %423 = vmatprep.subr.mxu0 0.0
        %424 = vmatpush1.msra.mxu0 0.0
        %425 = vmatprep.mubr.f32.mxu0 0.0
        %426 = vmatmul.mubr.f32.gmra.mrb[0].mxu0 %v317
        %v427 = vpop.f32.mrb[0].mxu0
        %v428 = vadd.f32 0.0, %v427
        %v429 = vpop.f32.mrb[0].mxu0
        %430 = vmatprep.mubr.f32.mxu0 0.0
        %431 = vmatmul.mubr.f32.gmra.mrb[0].mxu0 %v320
        %v432 = vpop.f32.mrb[0].mxu0
        %v433 = vadd.f32 0.0, %v432
        %v434 = vpop.f32.mrb[0].mxu0
        %435 = vmatprep.mubr.f32.mxu0 0.0
        %436 = vmatmul.mubr.f32.gmra.mrb[0].mxu0 %v323
        %v437 = vpop.f32.mrb[0].mxu0
        %v438 = vadd.f32 0.0, %v437
        %v439 = vpop.f32.mrb[0].mxu0
        %440 = vmatprep.mubr.f32.mxu0 0.0
        %441 = vmatmul.mubr.f32.gmra.mrb[0].mxu0 %v326
        %v442 = vpop.f32.mrb[0].mxu0
        %v443 = vadd.f32 0.0, %v442
        %v444 = vpop.f32.mrb[0].mxu0
        %445 = vmatprep.mubr.f32.mxu0 0.0
        %446 = vmatmul.mubr.f32.gmra.mrb[0].mxu0 %v329
        %v447 = vpop.f32.mrb[0].mxu0
        %v448 = vadd.f32 0.0, %v447
        %v449 = vpop.f32.mrb[0].mxu0
        %450 = vmatprep.mubr.f32.mxu0 0.0
        %451 = vmatmul.mubr.f32.gmra.mrb[0].mxu0 %v332
        %v452 = vpop.f32.mrb[0].mxu0
        %v453 = vadd.f32 0.0, %v452
        %v454 = vpop.f32.mrb[0].mxu0
        %455 = vmatprep.mubr.f32.mxu0 0.0
        %456 = vmatmul.mubr.f32.gmra.mrb[0].mxu0 %v335
        %v457 = vpop.f32.mrb[0].mxu0
        %v458 = vadd.f32 0.0, %v457
        %v459 = vpop.f32.mrb[0].mxu0
        %460 = vmatprep.mubr.f32.mxu0 0.0
        %461 = vmatmul.mubr.f32.gmra.mrb[0].mxu0 %v338
        %v462 = vpop.f32.mrb[0].mxu0
        %v463 = vadd.f32 0.0, %v462
        %v464 = vpop.f32.mrb[0].mxu0
        %465 = vmatprep.mubr.f32.mxu0 0.0
        %466 = vmatmul.mubr.f32.gmra.mrb[0].mxu0 %v341
        %v467 = vpop.f32.mrb[0].mxu0
        %v468 = vadd.f32 0.0, %v467
        %v469 = vpop.f32.mrb[0].mxu0
        %470 = vmatprep.mubr.f32.mxu0 0.0
        %471 = vmatmul.mubr.f32.gmra.mrb[0].mxu0 %v344
        %v472 = vpop.f32.mrb[0].mxu0
        %v473 = vadd.f32 0.0, %v472
        %v474 = vpop.f32.mrb[0].mxu0
        %475 = vmatprep.mubr.f32.mxu0 0.0
        %476 = vmatmul.mubr.f32.gmra.mrb[0].mxu0 %v347
        %v477 = vpop.f32.mrb[0].mxu0
        %v478 = vadd.f32 0.0, %v477
        %v479 = vpop.f32.mrb[0].mxu0
        %480 = vmatprep.mubr.f32.mxu0 0.0
        %481 = vmatmul.mubr.f32.gmra.mrb[0].mxu0 %v350
        %v482 = vpop.f32.mrb[0].mxu0
        %v483 = vadd.f32 0.0, %v482
        %v484 = vpop.f32.mrb[0].mxu0
        %485 = vmatprep.mubr.f32.mxu0 0.0
        %486 = vmatmul.mubr.f32.gmra.mrb[0].mxu0 %v353
        %v487 = vpop.f32.mrb[0].mxu0
        %v488 = vadd.f32 0.0, %v487
        %v489 = vpop.f32.mrb[0].mxu0
        %490 = vmatprep.mubr.f32.mxu0 0.0
        %491 = vmatmul.mubr.f32.gmra.mrb[0].mxu0 %v356
        %v492 = vpop.f32.mrb[0].mxu0
        %v493 = vadd.f32 0.0, %v492
        %v494 = vpop.f32.mrb[0].mxu0
        %495 = vmatprep.mubr.f32.mxu0 0.0
        %496 = vmatmul.mubr.f32.gmra.mrb[0].mxu0 %v359
        %v497 = vpop.f32.mrb[0].mxu0
        %v498 = vadd.f32 0.0, %v497
        %v499 = vpop.f32.mrb[0].mxu0
        %500 = vdwg.mxu0
        %501 = vxpose.xlu0.b32.start [1/16] %v428, 128
        %502 = vxpose.xlu0.b32.cont [2/16] %v433, 128
        %503 = vxpose.xlu0.b32.cont [3/16] %v438, 128
        %504 = vxpose.xlu0.b32.cont [4/16] 0.0, 128
        %505 = vxpose.xlu0.b32.cont [5/16] 0.0, 128
        %506 = vxpose.xlu0.b32.cont [6/16] 0.0, 128
        %507 = vxpose.xlu0.b32.cont [7/16] 0.0, 128
        %508 = vxpose.xlu0.b32.cont [8/16] 0.0, 128
        %509 = vxpose.xlu0.b32.cont [9/16] 0.0, 128
        %510 = vxpose.xlu0.b32.cont [10/16] 0.0, 128
        %511 = vxpose.xlu0.b32.cont [11/16] 0.0, 128
        %512 = vxpose.xlu0.b32.cont [12/16] 0.0, 128
        %513 = vxpose.xlu0.b32.cont [13/16] 0.0, 128
        %514 = vxpose.xlu0.b32.cont [14/16] 0.0, 128
        %515 = vxpose.xlu0.b32.cont [15/16] 0.0, 128
        %516 = vxpose.xlu0.b32.end [16/16] 0.0, 128
        %v517 = vpop.trf.xlu0
        %v518 = vpop.trf.xlu0
        %v519 = vpop.trf.xlu0
        %v520 = vpop.trf.xlu0
        %v521 = vpop.trf.xlu0
        %v522 = vpop.trf.xlu0
        %v523 = vpop.trf.xlu0
        %v524 = vpop.trf.xlu0
        %v525 = vpop.trf.xlu0
        %v526 = vpop.trf.xlu0
        %v527 = vpop.trf.xlu0
        %v528 = vpop.trf.xlu0
        %v529 = vpop.trf.xlu0
        %v530 = vpop.trf.xlu0
        %v531 = vpop.trf.xlu0
        %v532 = vpop.trf.xlu0
        %533 = vxpose.xlu0.b32.start [1/16] %v443, 128
        %534 = vxpose.xlu0.b32.cont [2/16] %v448, 128
        %535 = vxpose.xlu0.b32.cont [3/16] %v453, 128
        %536 = vxpose.xlu0.b32.cont [4/16] 0.0, 128
        %537 = vxpose.xlu0.b32.cont [5/16] 0.0, 128
        %538 = vxpose.xlu0.b32.cont [6/16] 0.0, 128
        %539 = vxpose.xlu0.b32.cont [7/16] 0.0, 128
        %540 = vxpose.xlu0.b32.cont [8/16] 0.0, 128
        %541 = vxpose.xlu0.b32.cont [9/16] 0.0, 128
        %542 = vxpose.xlu0.b32.cont [10/16] 0.0, 128
        %543 = vxpose.xlu0.b32.cont [11/16] 0.0, 128
        %544 = vxpose.xlu0.b32.cont [12/16] 0.0, 128
        %545 = vxpose.xlu0.b32.cont [13/16] 0.0, 128
        %546 = vxpose.xlu0.b32.cont [14/16] 0.0, 128
        %547 = vxpose.xlu0.b32.cont [15/16] 0.0, 128
        %548 = vxpose.xlu0.b32.end [16/16] 0.0, 128
        %v549 = vpop.trf.xlu0
        %v550 = vpop.trf.xlu0
        %v551 = vpop.trf.xlu0
        %v552 = vpop.trf.xlu0
        %v553 = vpop.trf.xlu0
        %v554 = vpop.trf.xlu0
        %v555 = vpop.trf.xlu0
        %v556 = vpop.trf.xlu0
        %v557 = vpop.trf.xlu0
        %v558 = vpop.trf.xlu0
        %v559 = vpop.trf.xlu0
        %v560 = vpop.trf.xlu0
        %v561 = vpop.trf.xlu0
        %v562 = vpop.trf.xlu0
        %v563 = vpop.trf.xlu0
        %v564 = vpop.trf.xlu0
        %565 = vxpose.xlu0.b32.start [1/16] %v458, 128
        %566 = vxpose.xlu0.b32.cont [2/16] %v463, 128
        %567 = vxpose.xlu0.b32.cont [3/16] %v468, 128
        %568 = vxpose.xlu0.b32.cont [4/16] 0.0, 128
        %569 = vxpose.xlu0.b32.cont [5/16] 0.0, 128
        %570 = vxpose.xlu0.b32.cont [6/16] 0.0, 128
        %571 = vxpose.xlu0.b32.cont [7/16] 0.0, 128
        %572 = vxpose.xlu0.b32.cont [8/16] 0.0, 128
        %573 = vxpose.xlu0.b32.cont [9/16] 0.0, 128
        %574 = vxpose.xlu0.b32.cont [10/16] 0.0, 128
        %575 = vxpose.xlu0.b32.cont [11/16] 0.0, 128
        %576 = vxpose.xlu0.b32.cont [12/16] 0.0, 128
        %577 = vxpose.xlu0.b32.cont [13/16] 0.0, 128
        %578 = vxpose.xlu0.b32.cont [14/16] 0.0, 128
        %579 = vxpose.xlu0.b32.cont [15/16] 0.0, 128
        %580 = vxpose.xlu0.b32.end [16/16] 0.0, 128
        %v581 = vpop.trf.xlu0
        %v582 = vpop.trf.xlu0
        %v583 = vpop.trf.xlu0
        %v584 = vpop.trf.xlu0
        %v585 = vpop.trf.xlu0
        %v586 = vpop.trf.xlu0
        %v587 = vpop.trf.xlu0
        %v588 = vpop.trf.xlu0
        %v589 = vpop.trf.xlu0
        %v590 = vpop.trf.xlu0
        %v591 = vpop.trf.xlu0
        %v592 = vpop.trf.xlu0
        %v593 = vpop.trf.xlu0
        %v594 = vpop.trf.xlu0
        %v595 = vpop.trf.xlu0
        %v596 = vpop.trf.xlu0
        %597 = vxpose.xlu0.b32.start [1/16] %v473, 128
        %598 = vxpose.xlu0.b32.cont [2/16] %v478, 128
        %599 = vxpose.xlu0.b32.cont [3/16] %v483, 128
        %600 = vxpose.xlu0.b32.cont [4/16] 0.0, 128
        %601 = vxpose.xlu0.b32.cont [5/16] 0.0, 128
        %602 = vxpose.xlu0.b32.cont [6/16] 0.0, 128
        %603 = vxpose.xlu0.b32.cont [7/16] 0.0, 128
        %604 = vxpose.xlu0.b32.cont [8/16] 0.0, 128
        %605 = vxpose.xlu0.b32.cont [9/16] 0.0, 128
        %606 = vxpose.xlu0.b32.cont [10/16] 0.0, 128
        %607 = vxpose.xlu0.b32.cont [11/16] 0.0, 128
        %608 = vxpose.xlu0.b32.cont [12/16] 0.0, 128
        %609 = vxpose.xlu0.b32.cont [13/16] 0.0, 128
        %610 = vxpose.xlu0.b32.cont [14/16] 0.0, 128
        %611 = vxpose.xlu0.b32.cont [15/16] 0.0, 128
        %612 = vxpose.xlu0.b32.end [16/16] 0.0, 128
        %v613 = vpop.trf.xlu0
        %v614 = vpop.trf.xlu0
        %v615 = vpop.trf.xlu0
        %v616 = vpop.trf.xlu0
        %v617 = vpop.trf.xlu0
        %v618 = vpop.trf.xlu0
        %v619 = vpop.trf.xlu0
        %v620 = vpop.trf.xlu0
        %v621 = vpop.trf.xlu0
        %v622 = vpop.trf.xlu0
        %v623 = vpop.trf.xlu0
        %v624 = vpop.trf.xlu0
        %v625 = vpop.trf.xlu0
        %v626 = vpop.trf.xlu0
        %v627 = vpop.trf.xlu0
        %v628 = vpop.trf.xlu0
        %629 = vxpose.xlu0.b32.start [1/16] %v488, 128
        %630 = vxpose.xlu0.b32.cont [2/16] %v493, 128
        %631 = vxpose.xlu0.b32.cont [3/16] %v498, 128
        %632 = vxpose.xlu0.b32.cont [4/16] 0.0, 128
        %633 = vxpose.xlu0.b32.cont [5/16] 0.0, 128
        %634 = vxpose.xlu0.b32.cont [6/16] 0.0, 128
        %635 = vxpose.xlu0.b32.cont [7/16] 0.0, 128
        %636 = vxpose.xlu0.b32.cont [8/16] 0.0, 128
        %637 = vxpose.xlu0.b32.cont [9/16] 0.0, 128
        %638 = vxpose.xlu0.b32.cont [10/16] 0.0, 128
        %639 = vxpose.xlu0.b32.cont [11/16] 0.0, 128
        %640 = vxpose.xlu0.b32.cont [12/16] 0.0, 128
        %641 = vxpose.xlu0.b32.cont [13/16] 0.0, 128
        %642 = vxpose.xlu0.b32.cont [14/16] 0.0, 128
        %643 = vxpose.xlu0.b32.cont [15/16] 0.0, 128
        %644 = vxpose.xlu0.b32.end [16/16] 0.0, 128
        %v645 = vpop.trf.xlu0
        %v646 = vpop.trf.xlu0
        %v647 = vpop.trf.xlu0
        %v648 = vpop.trf.xlu0
        %v649 = vpop.trf.xlu0
        %v650 = vpop.trf.xlu0
        %v651 = vpop.trf.xlu0
        %v652 = vpop.trf.xlu0
        %v653 = vpop.trf.xlu0
        %v654 = vpop.trf.xlu0
        %v655 = vpop.trf.xlu0
        %v656 = vpop.trf.xlu0
        %v657 = vpop.trf.xlu0
        %v658 = vpop.trf.xlu0
        %v659 = vpop.trf.xlu0
        %v660 = vpop.trf.xlu0
        %v671 = vcombine.high %v517, %v517
        %v673 = vunpack.c.l.s4 1983009808
        %v674 = vunpack.c.0.s8 %v673
        %v675 = vlaneseq
        %v676 = vshrl.u32 %v675, 7
        %v677 = vsub.s32 %v674, %v676
        %v678 = vrot.slane %v517, %v677
        %v680 = vunpack.c.l.s4 1983009808
        %v681 = vunpack.c.0.s8 %v680
        %v682 = vlaneseq
        %v683 = vshrl.u32 %v682, 7
        %v684 = vsub.s32 %v681, %v683
        %v685 = vrot.slane %v671, %v684
        %v686 = vcombine.high %v678, %v678
        %v687 = vcombine.high %v685, %v685
        %v688 = vcombine.high %v518, %v518
        %v690 = vunpack.c.l.s4 1983009808
        %v691 = vunpack.c.0.s8 %v690
        %v692 = vlaneseq
        %v693 = vshrl.u32 %v692, 7
        %v694 = vsub.s32 %v691, %v693
        %v695 = vrot.slane %v518, %v694
        %v697 = vunpack.c.l.s4 1983009808
        %v698 = vunpack.c.0.s8 %v697
        %v699 = vlaneseq
        %v700 = vshrl.u32 %v699, 7
        %v701 = vsub.s32 %v698, %v700
        %v702 = vrot.slane %v688, %v701
        %v703 = vcombine.high %v695, %v695
        %v704 = vcombine.high %v549, %v549
        %v706 = vunpack.c.l.s4 1983009808
        %v707 = vunpack.c.0.s8 %v706
        %v708 = vlaneseq
        %v709 = vshrl.u32 %v708, 7
        %v710 = vsub.s32 %v707, %v709
        %v711 = vrot.slane %v549, %v710
        %v713 = vunpack.c.l.s4 1983009808
        %v714 = vunpack.c.0.s8 %v713
        %v715 = vlaneseq
        %v716 = vshrl.u32 %v715, 7
        %v717 = vsub.s32 %v714, %v716
        %v718 = vrot.slane %v704, %v717
        %v719 = vcombine.high %v711, %v711
        %v720 = vcombine.high %v718, %v718
        %v721 = vcombine.high %v550, %v550
        %v723 = vunpack.c.l.s4 1983009808
        %v724 = vunpack.c.0.s8 %v723
        %v725 = vlaneseq
        %v726 = vshrl.u32 %v725, 7
        %v727 = vsub.s32 %v724, %v726
        %v728 = vrot.slane %v550, %v727
        %v730 = vunpack.c.l.s4 1983009808
        %v731 = vunpack.c.0.s8 %v730
        %v732 = vlaneseq
        %v733 = vshrl.u32 %v732, 7
        %v734 = vsub.s32 %v731, %v733
        %v735 = vrot.slane %v721, %v734
        %v736 = vcombine.high %v728, %v728
        %v737 = vcombine.high %v581, %v581
        %v739 = vunpack.c.l.s4 1983009808
        %v740 = vunpack.c.0.s8 %v739
        %v741 = vlaneseq
        %v742 = vshrl.u32 %v741, 7
        %v743 = vsub.s32 %v740, %v742
        %v744 = vrot.slane %v581, %v743
        %v746 = vunpack.c.l.s4 1983009808
        %v747 = vunpack.c.0.s8 %v746
        %v748 = vlaneseq
        %v749 = vshrl.u32 %v748, 7
        %v750 = vsub.s32 %v747, %v749
        %v751 = vrot.slane %v737, %v750
        %v752 = vcombine.high %v744, %v744
        %v753 = vcombine.high %v751, %v751
        %v754 = vcombine.high %v582, %v582
        %v756 = vunpack.c.l.s4 1983009808
        %v757 = vunpack.c.0.s8 %v756
        %v758 = vlaneseq
        %v759 = vshrl.u32 %v758, 7
        %v760 = vsub.s32 %v757, %v759
        %v761 = vrot.slane %v582, %v760
        %v763 = vunpack.c.l.s4 1983009808
        %v764 = vunpack.c.0.s8 %v763
        %v765 = vlaneseq
        %v766 = vshrl.u32 %v765, 7
        %v767 = vsub.s32 %v764, %v766
        %v768 = vrot.slane %v754, %v767
        %v769 = vcombine.high %v761, %v761
        %v770 = vcombine.high %v613, %v613
        %v772 = vunpack.c.l.s4 1983009808
        %v773 = vunpack.c.0.s8 %v772
        %v774 = vlaneseq
        %v775 = vshrl.u32 %v774, 7
        %v776 = vsub.s32 %v773, %v775
        %v777 = vrot.slane %v613, %v776
        %v779 = vunpack.c.l.s4 1983009808
        %v780 = vunpack.c.0.s8 %v779
        %v781 = vlaneseq
        %v782 = vshrl.u32 %v781, 7
        %v783 = vsub.s32 %v780, %v782
        %v784 = vrot.slane %v770, %v783
        %v785 = vcombine.high %v777, %v777
        %v786 = vcombine.high %v784, %v784
        %v787 = vcombine.high %v614, %v614
        %v789 = vunpack.c.l.s4 1983009808
        %v790 = vunpack.c.0.s8 %v789
        %v791 = vlaneseq
        %v792 = vshrl.u32 %v791, 7
        %v793 = vsub.s32 %v790, %v792
        %v794 = vrot.slane %v614, %v793
        %v796 = vunpack.c.l.s4 1983009808
        %v797 = vunpack.c.0.s8 %v796
        %v798 = vlaneseq
        %v799 = vshrl.u32 %v798, 7
        %v800 = vsub.s32 %v797, %v799
        %v801 = vrot.slane %v787, %v800
        %v802 = vcombine.high %v794, %v794
        %v803 = vcombine.high %v645, %v645
        %v805 = vunpack.c.l.s4 1983009808
        %v806 = vunpack.c.0.s8 %v805
        %v807 = vlaneseq
        %v808 = vshrl.u32 %v807, 7
        %v809 = vsub.s32 %v806, %v808
        %v810 = vrot.slane %v645, %v809
        %v812 = vunpack.c.l.s4 1983009808
        %v813 = vunpack.c.0.s8 %v812
        %v814 = vlaneseq
        %v815 = vshrl.u32 %v814, 7
        %v816 = vsub.s32 %v813, %v815
        %v817 = vrot.slane %v803, %v816
        %v818 = vcombine.high %v810, %v810
        %v819 = vcombine.high %v817, %v817
        %v820 = vcombine.high %v646, %v646
        %v822 = vunpack.c.l.s4 1983009808
        %v823 = vunpack.c.0.s8 %v822
        %v824 = vlaneseq
        %v825 = vshrl.u32 %v824, 7
        %v826 = vsub.s32 %v823, %v825
        %v827 = vrot.slane %v646, %v826
        %v829 = vunpack.c.l.s4 1983009808
        %v830 = vunpack.c.0.s8 %v829
        %v831 = vlaneseq
        %v832 = vshrl.u32 %v831, 7
        %v833 = vsub.s32 %v830, %v832
        %v834 = vrot.slane %v820, %v833
        %v835 = vcombine.high %v827, %v827
        %v836 = vcombine.low %v678, %v686
        %v837 = vcombine.low %v685, %v687
        %v839 = vunpack.c.l.s4 1983009808
        %v840 = vunpack.c.0.s8 %v839
        %v841 = vlaneseq
        %v842 = vshrl.u32 %v841, 7
        %v843 = vsub.s32 %v840, %v842
        %v844 = vrot.slane %v836, %v843
        %v846 = vunpack.c.l.s4 1983009808
        %v847 = vunpack.c.0.s8 %v846
        %v848 = vlaneseq
        %v849 = vshrl.u32 %v848, 7
        %v850 = vsub.s32 %v847, %v849
        %v851 = vrot.slane %v837, %v850
        %v852 = vcombine.low %v844, %v851
        %v853 = vcombine.low %v695, %v703
        %v854 = vcombine.low %v702, %v711
        %v856 = vunpack.c.l.s4 1983009808
        %v857 = vunpack.c.0.s8 %v856
        %v858 = vlaneseq
        %v859 = vshrl.u32 %v858, 7
        %v860 = vsub.s32 %v857, %v859
        %v861 = vrot.slane %v853, %v860
        %v863 = vunpack.c.l.s4 1983009808
        %v864 = vunpack.c.0.s8 %v863
        %v865 = vlaneseq
        %v866 = vshrl.u32 %v865, 7
        %v867 = vsub.s32 %v864, %v866
        %v868 = vrot.slane %v854, %v867
        %v869 = vcombine.low %v861, %v868
        %v870 = vcombine.low %v719, %v718
        %v871 = vcombine.low %v720, %v728
        %v873 = vunpack.c.l.s4 1983009808
        %v874 = vunpack.c.0.s8 %v873
        %v875 = vlaneseq
        %v876 = vshrl.u32 %v875, 7
        %v877 = vsub.s32 %v874, %v876
        %v878 = vrot.slane %v870, %v877
        %v880 = vunpack.c.l.s4 1983009808
        %v881 = vunpack.c.0.s8 %v880
        %v882 = vlaneseq
        %v883 = vshrl.u32 %v882, 7
        %v884 = vsub.s32 %v881, %v883
        %v885 = vrot.slane %v871, %v884
        %v886 = vcombine.low %v878, %v885
        %v887 = vcombine.low %v736, %v735
        %v888 = vcombine.low %v744, %v752
        %v890 = vunpack.c.l.s4 1983009808
        %v891 = vunpack.c.0.s8 %v890
        %v892 = vlaneseq
        %v893 = vshrl.u32 %v892, 7
        %v894 = vsub.s32 %v891, %v893
        %v895 = vrot.slane %v887, %v894
        %v897 = vunpack.c.l.s4 1983009808
        %v898 = vunpack.c.0.s8 %v897
        %v899 = vlaneseq
        %v900 = vshrl.u32 %v899, 7
        %v901 = vsub.s32 %v898, %v900
        %v902 = vrot.slane %v888, %v901
        %v903 = vcombine.low %v895, %v902
        %v904 = vcombine.low %v751, %v753
        %v905 = vcombine.low %v761, %v769
        %v907 = vunpack.c.l.s4 1983009808
        %v908 = vunpack.c.0.s8 %v907
        %v909 = vlaneseq
        %v910 = vshrl.u32 %v909, 7
        %v911 = vsub.s32 %v908, %v910
        %v912 = vrot.slane %v904, %v911
        %v914 = vunpack.c.l.s4 1983009808
        %v915 = vunpack.c.0.s8 %v914
        %v916 = vlaneseq
        %v917 = vshrl.u32 %v916, 7
        %v918 = vsub.s32 %v915, %v917
        %v919 = vrot.slane %v905, %v918
        %v920 = vcombine.low %v912, %v919
        %v921 = vcombine.low %v768, %v777
        %v922 = vcombine.low %v785, %v784
        %v924 = vunpack.c.l.s4 1983009808
        %v925 = vunpack.c.0.s8 %v924
        %v926 = vlaneseq
        %v927 = vshrl.u32 %v926, 7
        %v928 = vsub.s32 %v925, %v927
        %v929 = vrot.slane %v921, %v928
        %v931 = vunpack.c.l.s4 1983009808
        %v932 = vunpack.c.0.s8 %v931
        %v933 = vlaneseq
        %v934 = vshrl.u32 %v933, 7
        %v935 = vsub.s32 %v932, %v934
        %v936 = vrot.slane %v922, %v935
        %v937 = vcombine.low %v929, %v936
        %v938 = vcombine.low %v786, %v794
        %v939 = vcombine.low %v802, %v801
        %v941 = vunpack.c.l.s4 1983009808
        %v942 = vunpack.c.0.s8 %v941
        %v943 = vlaneseq
        %v944 = vshrl.u32 %v943, 7
        %v945 = vsub.s32 %v942, %v944
        %v946 = vrot.slane %v938, %v945
        %v948 = vunpack.c.l.s4 1983009808
        %v949 = vunpack.c.0.s8 %v948
        %v950 = vlaneseq
        %v951 = vshrl.u32 %v950, 7
        %v952 = vsub.s32 %v949, %v951
        %v953 = vrot.slane %v939, %v952
        %v954 = vcombine.low %v946, %v953
        %v955 = vcombine.low %v810, %v818
        %v956 = vcombine.low %v817, %v819
        %v958 = vunpack.c.l.s4 1983009808
        %v959 = vunpack.c.0.s8 %v958
        %v960 = vlaneseq
        %v961 = vshrl.u32 %v960, 7
        %v962 = vsub.s32 %v959, %v961
        %v963 = vrot.slane %v955, %v962
        %v965 = vunpack.c.l.s4 1983009808
        %v966 = vunpack.c.0.s8 %v965
        %v967 = vlaneseq
        %v968 = vshrl.u32 %v967, 7
        %v969 = vsub.s32 %v966, %v968
        %v970 = vrot.slane %v956, %v969
        %v971 = vcombine.low %v963, %v970
        %v972 = vcombine.low %v827, %v835
        %v974 = vunpack.c.l.s4 1983009808
        %v975 = vunpack.c.0.s8 %v974
        %v976 = vlaneseq
        %v977 = vshrl.u32 %v976, 7
        %v978 = vsub.s32 %v975, %v977
        %v979 = vrot.slane %v972, %v978
        %v981 = vunpack.c.l.s4 1983009808
        %v982 = vunpack.c.0.s8 %v981
        %v983 = vlaneseq
        %v984 = vshrl.u32 %v983, 7
        %v985 = vsub.s32 %v982, %v984
        %v986 = vrot.slane %v834, %v985
        %v987 = vcombine.low %v979, %v986
        %v988 = vsel %vm315, %v852, 0
        %v990 = vsel %vm315, %v869, 0
        %v992 = vsel %vm315, %v886, 0
        %v994 = vsel %vm315, %v903, 0
        %v996 = vsel %vm315, %v920, 0
        %v998 = vsel %vm315, %v937, 0
        %v1000 = vsel %vm315, %v954, 0
        %v1002 = vsel %vm315, %v971, 0
        %v1004 = vsel %vm315, %v987, 0
        %1006 = vmatprep.subr.mxu0 0.0
        %1007 = vmatpush1.msra.mxu0 %v303
        %1008 = vmatprep.subr.mxu0 0.0
        %1009 = vmatpush1.msra.mxu0 %v304
        %1010 = vmatprep.subr.mxu0 0.0
        %1011 = vmatpush1.msra.mxu0 %v305
        %1012 = vmatprep.subr.mxu0 0.0
        %1013 = vmatpush1.msra.mxu0 0.0
        %1014 = vmatprep.subr.mxu0 0.0
        %1015 = vmatpush1.msra.mxu0 0.0
        %1016 = vmatprep.subr.mxu0 0.0
        %1017 = vmatpush1.msra.mxu0 0.0
        %1018 = vmatprep.subr.mxu0 0.0
        %1019 = vmatpush1.msra.mxu0 0.0
        %1020 = vmatprep.subr.mxu0 0.0
        %1021 = vmatpush1.msra.mxu0 0.0
        %1022 = vmatprep.subr.mxu0 0.0
        %1023 = vmatpush1.msra.mxu0 0.0
        %1024 = vmatprep.subr.mxu0 0.0
        %1025 = vmatpush1.msra.mxu0 0.0
        %1026 = vmatprep.subr.mxu0 0.0
        %1027 = vmatpush1.msra.mxu0 0.0
        %1028 = vmatprep.subr.mxu0 0.0
        %1029 = vmatpush1.msra.mxu0 0.0
        %1030 = vmatprep.subr.mxu0 0.0
        %1031 = vmatpush1.msra.mxu0 0.0
        %1032 = vmatprep.subr.mxu0 0.0
        %1033 = vmatpush1.msra.mxu0 0.0
        %1034 = vmatprep.subr.mxu0 0.0
        %1035 = vmatpush1.msra.mxu0 0.0
        %1036 = vmatprep.subr.mxu0 0.0
        %1037 = vmatpush1.msra.mxu0 0.0
        %1038 = vmatprep.subr.mxu0 0.0
        %1039 = vmatpush1.msra.mxu0 0.0
        %1040 = vmatprep.subr.mxu0 0.0
        %1041 = vmatpush1.msra.mxu0 0.0
        %1042 = vmatprep.subr.mxu0 0.0
        %1043 = vmatpush1.msra.mxu0 0.0
        %1044 = vmatprep.subr.mxu0 0.0
        %1045 = vmatpush1.msra.mxu0 0.0
        %1046 = vmatprep.subr.mxu0 0.0
        %1047 = vmatpush1.msra.mxu0 0.0
        %1048 = vmatprep.subr.mxu0 0.0
        %1049 = vmatpush1.msra.mxu0 0.0
        %1050 = vmatprep.subr.mxu0 0.0
        %1051 = vmatpush1.msra.mxu0 0.0
        %1052 = vmatprep.subr.mxu0 0.0
        %1053 = vmatpush1.msra.mxu0 0.0
        %1054 = vmatprep.subr.mxu0 0.0
        %1055 = vmatpush1.msra.mxu0 0.0
        %1056 = vmatprep.subr.mxu0 0.0
        %1057 = vmatpush1.msra.mxu0 0.0
        %1058 = vmatprep.subr.mxu0 0.0
        %1059 = vmatpush1.msra.mxu0 0.0
        %1060 = vmatprep.subr.mxu0 0.0
        %1061 = vmatpush1.msra.mxu0 0.0
        %1062 = vmatprep.subr.mxu0 0.0
        %1063 = vmatpush1.msra.mxu0 0.0
        %1064 = vmatprep.subr.mxu0 0.0
        %1065 = vmatpush1.msra.mxu0 0.0
        %1066 = vmatprep.subr.mxu0 0.0
        %1067 = vmatpush1.msra.mxu0 0.0
        %1068 = vmatprep.subr.mxu0 0.0
        %1069 = vmatpush1.msra.mxu0 0.0
        %1070 = vmatprep.mubr.f32.mxu0 0.0
        %1071 = vmatmul.mubr.f32.gmra.mrb[0].mxu0 %v988
        %v1072 = vpop.f32.mrb[0].mxu0
        %v1073 = vadd.f32 0.0, %v1072
        %v1074 = vpop.f32.mrb[0].mxu0
        %1075 = vmatprep.mubr.f32.mxu0 0.0
        %1076 = vmatmul.mubr.f32.gmra.mrb[0].mxu0 %v990
        %v1077 = vpop.f32.mrb[0].mxu0
        %v1078 = vadd.f32 0.0, %v1077
        %v1079 = vpop.f32.mrb[0].mxu0
        %1080 = vmatprep.mubr.f32.mxu0 0.0
        %1081 = vmatmul.mubr.f32.gmra.mrb[0].mxu0 %v992
        %v1082 = vpop.f32.mrb[0].mxu0
        %v1083 = vadd.f32 0.0, %v1082
        %v1084 = vpop.f32.mrb[0].mxu0
        %1085 = vmatprep.mubr.f32.mxu0 0.0
        %1086 = vmatmul.mubr.f32.gmra.mrb[0].mxu0 %v994
        %v1087 = vpop.f32.mrb[0].mxu0
        %v1088 = vadd.f32 0.0, %v1087
        %v1089 = vpop.f32.mrb[0].mxu0
        %1090 = vmatprep.mubr.f32.mxu0 0.0
        %1091 = vmatmul.mubr.f32.gmra.mrb[0].mxu0 %v996
        %v1092 = vpop.f32.mrb[0].mxu0
        %v1093 = vadd.f32 0.0, %v1092
        %v1094 = vpop.f32.mrb[0].mxu0
        %1095 = vmatprep.mubr.f32.mxu0 0.0
        %1096 = vmatmul.mubr.f32.gmra.mrb[0].mxu0 %v998
        %v1097 = vpop.f32.mrb[0].mxu0
        %v1098 = vadd.f32 0.0, %v1097
        %v1099 = vpop.f32.mrb[0].mxu0
        %1100 = vmatprep.mubr.f32.mxu0 0.0
        %1101 = vmatmul.mubr.f32.gmra.mrb[0].mxu0 %v1000
        %v1102 = vpop.f32.mrb[0].mxu0
        %v1103 = vadd.f32 0.0, %v1102
        %v1104 = vpop.f32.mrb[0].mxu0
        %1105 = vmatprep.mubr.f32.mxu0 0.0
        %1106 = vmatmul.mubr.f32.gmra.mrb[0].mxu0 %v1002
        %v1107 = vpop.f32.mrb[0].mxu0
        %v1108 = vadd.f32 0.0, %v1107
        %v1109 = vpop.f32.mrb[0].mxu0
        %1110 = vmatprep.mubr.f32.mxu0 0.0
        %1111 = vmatmul.mubr.f32.gmra.mrb[0].mxu0 %v1004
        %v1112 = vpop.f32.mrb[0].mxu0
        %v1113 = vadd.f32 0.0, %v1112
        %v1114 = vpop.f32.mrb[0].mxu0
        %1115 = vdwg.mxu0
        %v1125 = vcombine.high %v1073, %v1073
        %v1127 = vunpack.c.l.s4 1983009808
        %v1128 = vunpack.c.0.s8 %v1127
        %v1129 = vlaneseq
        %v1130 = vshrl.u32 %v1129, 7
        %v1131 = vsub.s32 %v1128, %v1130
        %v1132 = vrot.slane %v1073, %v1131
        %v1134 = vunpack.c.l.s4 1983009808
        %v1135 = vunpack.c.0.s8 %v1134
        %v1136 = vlaneseq
        %v1137 = vshrl.u32 %v1136, 7
        %v1138 = vsub.s32 %v1135, %v1137
        %v1139 = vrot.slane %v1125, %v1138
        %v1140 = vcombine.high %v1132, %v1132
        %v1141 = vcombine.high %v1139, %v1139
        %v1142 = vcombine.high %v1078, %v1078
        %v1144 = vunpack.c.l.s4 1983009808
        %v1145 = vunpack.c.0.s8 %v1144
        %v1146 = vlaneseq
        %v1147 = vshrl.u32 %v1146, 7
        %v1148 = vsub.s32 %v1145, %v1147
        %v1149 = vrot.slane %v1078, %v1148
        %v1151 = vunpack.c.l.s4 1983009808
        %v1152 = vunpack.c.0.s8 %v1151
        %v1153 = vlaneseq
        %v1154 = vshrl.u32 %v1153, 7
        %v1155 = vsub.s32 %v1152, %v1154
        %v1156 = vrot.slane %v1142, %v1155
        %v1157 = vcombine.high %v1149, %v1149
        %v1158 = vcombine.high %v1156, %v1156
        %v1159 = vcombine.high %v1083, %v1083
        %v1161 = vunpack.c.l.s4 1983009808
        %v1162 = vunpack.c.0.s8 %v1161
        %v1163 = vlaneseq
        %v1164 = vshrl.u32 %v1163, 7
        %v1165 = vsub.s32 %v1162, %v1164
        %v1166 = vrot.slane %v1083, %v1165
        %v1168 = vunpack.c.l.s4 1983009808
        %v1169 = vunpack.c.0.s8 %v1168
        %v1170 = vlaneseq
        %v1171 = vshrl.u32 %v1170, 7
        %v1172 = vsub.s32 %v1169, %v1171
        %v1173 = vrot.slane %v1159, %v1172
        %v1174 = vcombine.high %v1166, %v1166
        %v1175 = vcombine.high %v1173, %v1173
        %v1176 = vcombine.high %v1088, %v1088
        %v1178 = vunpack.c.l.s4 1983009808
        %v1179 = vunpack.c.0.s8 %v1178
        %v1180 = vlaneseq
        %v1181 = vshrl.u32 %v1180, 7
        %v1182 = vsub.s32 %v1179, %v1181
        %v1183 = vrot.slane %v1088, %v1182
        %v1185 = vunpack.c.l.s4 1983009808
        %v1186 = vunpack.c.0.s8 %v1185
        %v1187 = vlaneseq
        %v1188 = vshrl.u32 %v1187, 7
        %v1189 = vsub.s32 %v1186, %v1188
        %v1190 = vrot.slane %v1176, %v1189
        %v1191 = vcombine.high %v1183, %v1183
        %v1192 = vcombine.high %v1190, %v1190
        %v1193 = vcombine.high %v1093, %v1093
        %v1195 = vunpack.c.l.s4 1983009808
        %v1196 = vunpack.c.0.s8 %v1195
        %v1197 = vlaneseq
        %v1198 = vshrl.u32 %v1197, 7
        %v1199 = vsub.s32 %v1196, %v1198
        %v1200 = vrot.slane %v1093, %v1199
        %v1202 = vunpack.c.l.s4 1983009808
        %v1203 = vunpack.c.0.s8 %v1202
        %v1204 = vlaneseq
        %v1205 = vshrl.u32 %v1204, 7
        %v1206 = vsub.s32 %v1203, %v1205
        %v1207 = vrot.slane %v1193, %v1206
        %v1208 = vcombine.high %v1200, %v1200
        %v1209 = vcombine.high %v1207, %v1207
        %v1210 = vcombine.high %v1098, %v1098
        %v1212 = vunpack.c.l.s4 1983009808
        %v1213 = vunpack.c.0.s8 %v1212
        %v1214 = vlaneseq
        %v1215 = vshrl.u32 %v1214, 7
        %v1216 = vsub.s32 %v1213, %v1215
        %v1217 = vrot.slane %v1098, %v1216
        %v1219 = vunpack.c.l.s4 1983009808
        %v1220 = vunpack.c.0.s8 %v1219
        %v1221 = vlaneseq
        %v1222 = vshrl.u32 %v1221, 7
        %v1223 = vsub.s32 %v1220, %v1222
        %v1224 = vrot.slane %v1210, %v1223
        %v1225 = vcombine.high %v1217, %v1217
        %v1226 = vcombine.high %v1224, %v1224
        %v1227 = vcombine.high %v1103, %v1103
        %v1229 = vunpack.c.l.s4 1983009808
        %v1230 = vunpack.c.0.s8 %v1229
        %v1231 = vlaneseq
        %v1232 = vshrl.u32 %v1231, 7
        %v1233 = vsub.s32 %v1230, %v1232
        %v1234 = vrot.slane %v1103, %v1233
        %v1236 = vunpack.c.l.s4 1983009808
        %v1237 = vunpack.c.0.s8 %v1236
        %v1238 = vlaneseq
        %v1239 = vshrl.u32 %v1238, 7
        %v1240 = vsub.s32 %v1237, %v1239
        %v1241 = vrot.slane %v1227, %v1240
        %v1242 = vcombine.high %v1234, %v1234
        %v1243 = vcombine.high %v1241, %v1241
        %v1244 = vcombine.high %v1108, %v1108
        %v1246 = vunpack.c.l.s4 1983009808
        %v1247 = vunpack.c.0.s8 %v1246
        %v1248 = vlaneseq
        %v1249 = vshrl.u32 %v1248, 7
        %v1250 = vsub.s32 %v1247, %v1249
        %v1251 = vrot.slane %v1108, %v1250
        %v1253 = vunpack.c.l.s4 1983009808
        %v1254 = vunpack.c.0.s8 %v1253
        %v1255 = vlaneseq
        %v1256 = vshrl.u32 %v1255, 7
        %v1257 = vsub.s32 %v1254, %v1256
        %v1258 = vrot.slane %v1244, %v1257
        %v1259 = vcombine.high %v1251, %v1251
        %v1260 = vcombine.high %v1258, %v1258
        %v1261 = vcombine.high %v1113, %v1113
        %v1263 = vunpack.c.l.s4 1983009808
        %v1264 = vunpack.c.0.s8 %v1263
        %v1265 = vlaneseq
        %v1266 = vshrl.u32 %v1265, 7
        %v1267 = vsub.s32 %v1264, %v1266
        %v1268 = vrot.slane %v1113, %v1267
        %v1270 = vunpack.c.l.s4 1983009808
        %v1271 = vunpack.c.0.s8 %v1270
        %v1272 = vlaneseq
        %v1273 = vshrl.u32 %v1272, 7
        %v1274 = vsub.s32 %v1271, %v1273
        %v1275 = vrot.slane %v1261, %v1274
        %v1276 = vcombine.high %v1268, %v1268
        %v1312 = vmul.f32 %v1132, %v1132
        %v1313 = vmul.f32 %v1140, %v1140
        %v1314 = vmul.f32 %v1139, %v1139
        %v1315 = vmul.f32 %v1141, %v1141
        %v1316 = vmul.f32 %v1149, %v1149
        %v1317 = vmul.f32 %v1157, %v1157
        %v1318 = vmul.f32 %v1156, %v1156
        %v1319 = vmul.f32 %v1158, %v1158
        %v1320 = vmul.f32 %v1166, %v1166
        %v1321 = vmul.f32 %v1174, %v1174
        %v1322 = vmul.f32 %v1173, %v1173
        %v1323 = vmul.f32 %v1175, %v1175
        %v1324 = vmul.f32 %v1183, %v1183
        %v1325 = vmul.f32 %v1191, %v1191
        %v1326 = vmul.f32 %v1132, %v1158
        %v1327 = vmul.f32 %v1140, %v1166
        %v1328 = vmul.f32 %v1139, %v1174
        %v1329 = vmul.f32 %v1141, %v1173
        %v1330 = vmul.f32 %v1149, %v1175
        %v1331 = vmul.f32 %v1157, %v1183
        %v1332 = vmul.f32 %v1156, %v1191
        %v1333 = vsub.f32 %v1190, %v1312
        %v1334 = vsub.f32 %v1192, %v1313
        %v1335 = vsub.f32 %v1200, %v1314
        %v1336 = vsub.f32 %v1208, %v1315
        %v1337 = vsub.f32 %v1207, %v1316
        %v1338 = vsub.f32 %v1209, %v1317
        %v1339 = vsub.f32 %v1217, %v1318
        %v1340 = vsub.f32 %v1225, %v1319
        %v1341 = vsub.f32 %v1224, %v1320
        %v1342 = vsub.f32 %v1226, %v1321
        %v1343 = vsub.f32 %v1234, %v1322
        %v1344 = vsub.f32 %v1242, %v1323
        %v1345 = vsub.f32 %v1241, %v1324
        %v1346 = vsub.f32 %v1243, %v1325
        %v1347 = vsub.f32 %v1251, %v1326
        %v1348 = vsub.f32 %v1259, %v1327
        %v1349 = vsub.f32 %v1258, %v1328
        %v1350 = vsub.f32 %v1260, %v1329
        %v1351 = vsub.f32 %v1268, %v1330
        %v1352 = vsub.f32 %v1276, %v1331
        %v1353 = vsub.f32 %v1275, %v1332
        %v1354 = vmul.f32 %v1326, 2.0
        %v1355 = vmul.f32 %v1327, 2.0
        %v1356 = vmul.f32 %v1328, 2.0
        %v1357 = vmul.f32 %v1329, 2.0
        %v1358 = vmul.f32 %v1330, 2.0
        %v1359 = vmul.f32 %v1331, 2.0
        %v1360 = vmul.f32 %v1332, 2.0
        %v1361 = vadd.f32 %v1354, 4e-08
        %v1362 = vadd.f32 %v1355, 4e-08
        %v1363 = vadd.f32 %v1356, 4e-08
        %v1364 = vadd.f32 %v1357, 4e-08
        %v1365 = vadd.f32 %v1358, 4e-08
        %v1366 = vadd.f32 %v1359, 4e-08
        %v1367 = vadd.f32 %v1360, 4e-08
        %v1368 = vmul.f32 %v1347, 2.0
        %v1369 = vmul.f32 %v1348, 2.0
        %v1370 = vmul.f32 %v1349, 2.0
        %v1371 = vmul.f32 %v1350, 2.0
        %v1372 = vmul.f32 %v1351, 2.0
        %v1373 = vmul.f32 %v1352, 2.0
        %v1374 = vmul.f32 %v1353, 2.0
        %v1375 = vadd.f32 %v1368, 4e-06
        %v1376 = vadd.f32 %v1369, 4e-06
        %v1377 = vadd.f32 %v1370, 4e-06
        %v1378 = vadd.f32 %v1371, 4e-06
        %v1379 = vadd.f32 %v1372, 4e-06
        %v1380 = vadd.f32 %v1373, 4e-06
        %v1381 = vadd.f32 %v1374, 4e-06
        %v1382 = vmul.f32 %v1361, %v1375
        %v1383 = vmul.f32 %v1362, %v1376
        %v1384 = vmul.f32 %v1363, %v1377
        %v1385 = vmul.f32 %v1364, %v1378
        %v1386 = vmul.f32 %v1365, %v1379
        %v1387 = vmul.f32 %v1366, %v1380
        %v1388 = vmul.f32 %v1367, %v1381
        %v1389 = vadd.f32 %v1312, %v1319
        %v1390 = vadd.f32 %v1313, %v1320
        %v1391 = vadd.f32 %v1314, %v1321
        %v1392 = vadd.f32 %v1315, %v1322
        %v1393 = vadd.f32 %v1316, %v1323
        %v1394 = vadd.f32 %v1317, %v1324
        %v1395 = vadd.f32 %v1318, %v1325
        %v1396 = vadd.f32 %v1389, 4e-08
        %v1397 = vadd.f32 %v1390, 4e-08
        %v1398 = vadd.f32 %v1391, 4e-08
        %v1399 = vadd.f32 %v1392, 4e-08
        %v1400 = vadd.f32 %v1393, 4e-08
        %v1401 = vadd.f32 %v1394, 4e-08
        %v1402 = vadd.f32 %v1395, 4e-08
        %v1403 = vadd.f32 %v1333, %v1340
        %v1404 = vadd.f32 %v1334, %v1341
        %v1405 = vadd.f32 %v1335, %v1342
        %v1406 = vadd.f32 %v1336, %v1343
        %v1407 = vadd.f32 %v1337, %v1344
        %v1408 = vadd.f32 %v1338, %v1345
        %v1409 = vadd.f32 %v1339, %v1346
        %v1410 = vadd.f32 %v1403, 4e-06
        %v1411 = vadd.f32 %v1404, 4e-06
        %v1412 = vadd.f32 %v1405, 4e-06
        %v1413 = vadd.f32 %v1406, 4e-06
        %v1414 = vadd.f32 %v1407, 4e-06
        %v1415 = vadd.f32 %v1408, 4e-06
        %v1416 = vadd.f32 %v1409, 4e-06
        %v1417 = vmul.f32 %v1396, %v1410
        %v1418 = vmul.f32 %v1397, %v1411
        %v1419 = vmul.f32 %v1398, %v1412
        %v1420 = vmul.f32 %v1399, %v1413
        %v1421 = vmul.f32 %v1400, %v1414
        %v1422 = vmul.f32 %v1401, %v1415
        %v1423 = vmul.f32 %v1402, %v1416
        %v1424 = vrcp.pop %v1417
        %v1425 = vrcp.pop %v1418
        %v1426 = vrcp.pop %v1419
        %v1427 = vrcp.pop %v1420
        %v1428 = vrcp.pop %v1421
        %v1429 = vrcp.pop %v1422
        %v1430 = vrcp.pop %v1423
        %v1431 = vmul.f32 %v1417, %v1424
        %v1432 = vmul.f32 %v1418, %v1425
        %v1433 = vmul.f32 %v1419, %v1426
        %v1434 = vmul.f32 %v1420, %v1427
        %v1435 = vmul.f32 %v1421, %v1428
        %v1436 = vmul.f32 %v1422, %v1429
        %v1437 = vmul.f32 %v1423, %v1430
        %v1438 = vsub.f32 2.0, %v1431
        %v1439 = vsub.f32 2.0, %v1432
        %v1440 = vsub.f32 2.0, %v1433
        %v1441 = vsub.f32 2.0, %v1434
        %v1442 = vsub.f32 2.0, %v1435
        %v1443 = vsub.f32 2.0, %v1436
        %v1444 = vsub.f32 2.0, %v1437
        %v1445 = vmul.f32 %v1424, %v1438
        %v1446 = vmul.f32 %v1425, %v1439
        %v1447 = vmul.f32 %v1426, %v1440
        %v1448 = vmul.f32 %v1427, %v1441
        %v1449 = vmul.f32 %v1428, %v1442
        %v1450 = vmul.f32 %v1429, %v1443
        %v1451 = vmul.f32 %v1430, %v1444
        %v1452 = vmul.f32 %v1382, %v1445
        %v1453 = vmul.f32 %v1383, %v1446
        %v1454 = vmul.f32 %v1384, %v1447
        %v1455 = vmul.f32 %v1385, %v1448
        %v1456 = vmul.f32 %v1386, %v1449
        %v1457 = vmul.f32 %v1387, %v1450
        %v1458 = vmul.f32 %v1388, %v1451
        %v1459 = vsub.f32 1.0, %v1452
        %v1460 = vsub.f32 1.0, %v1453
        %v1461 = vsub.f32 1.0, %v1454
        %v1462 = vsub.f32 1.0, %v1455
        %v1463 = vsub.f32 1.0, %v1456
        %v1464 = vsub.f32 1.0, %v1457
        %v1465 = vsub.f32 1.0, %v1458
        %v1473 = vcombine.low %v1459, %v1460
        %v1474 = vcombine.low %v1461, %v1462
        %v1476 = vunpack.c.l.s4 1983009808
        %v1477 = vunpack.c.0.s8 %v1476
        %v1478 = vlaneseq
        %v1479 = vshrl.u32 %v1478, 7
        %v1480 = vsub.s32 %v1477, %v1479
        %v1481 = vrot.slane %v1473, %v1480
        %v1483 = vunpack.c.l.s4 1983009808
        %v1484 = vunpack.c.0.s8 %v1483
        %v1485 = vlaneseq
        %v1486 = vshrl.u32 %v1485, 7
        %v1487 = vsub.s32 %v1484, %v1486
        %v1488 = vrot.slane %v1474, %v1487
        %v1489 = vcombine.low %v1481, %v1488
        %v1490 = vcombine.low %v1463, %v1464
        %v1492 = vunpack.c.l.s4 1983009808
        %v1493 = vunpack.c.0.s8 %v1492
        %v1494 = vlaneseq
        %v1495 = vshrl.u32 %v1494, 7
        %v1496 = vsub.s32 %v1493, %v1495
        %v1497 = vrot.slane %v1490, %v1496
        %v1499 = vunpack.c.l.s4 1983009808
        %v1500 = vunpack.c.0.s8 %v1499
        %v1501 = vlaneseq
        %v1502 = vshrl.u32 %v1501, 7
        %v1503 = vsub.s32 %v1500, %v1502
        %v1504 = vrot.slane %v1465, %v1503
        %v1505 = vcombine.low %v1497, %v1504
        %vm1508 = vcmask 113664
        %v1509 = vsel %vm1508, %v1489, 0.0
        %vm1510 = vcmask 111616
        %v1511 = vsel %vm1510, %v1505, 0.0
        %v1512 = vadd.f32 %v1509, %v1511
        %1513 = vadd.xlane.f32.xlu0 %v1512
        %v1514 = vpop.xlane.xlu0 %1513
        %v1515 = vrot.slane %v1514, 4
        %v1516 = vadd.f32 %v1514, %v1515
        %v1517 = vrot.slane %v1516, 2
        %v1518 = vadd.f32 %v1516, %v1517
        %v1519 = vrot.slane %v1518, 1
        %v1520 = vadd.f32 %v1518, %v1519
        %s1521 = vtos %v1520
        %v1522 = vsub.f32 %v294, %v297
        %v1523 = vsub.f32 %v295, %v298
        %v1524 = vsub.f32 %v296, %v299
        %v1525 = vand.u32 2147483647, %v1522
        %v1526 = vand.u32 2147483647, %v1523
        %v1527 = vand.u32 2147483647, %v1524
        %v1528 = vsel %vm315, %v1525, 0.0
        %v1529 = vsel %vm315, %v1526, 0.0
        %v1530 = vadd.f32 %v1528, %v1529
        %v1531 = vsel %vm315, %v1527, 0.0
        %v1532 = vadd.f32 %v1530, %v1531
        %1533 = vadd.xlane.f32.xlu0 %v1532
        %v1534 = vpop.xlane.xlu0 %1533
        %v1535 = vrot.slane %v1534, 4
        %v1536 = vadd.f32 %v1534, %v1535
        %v1537 = vrot.slane %v1536, 2
        %v1538 = vadd.f32 %v1536, %v1537
        %v1539 = vrot.slane %v1538, 1
        %v1540 = vadd.f32 %v1538, %v1539
        %s1541 = vtos %v1540
        %v1542 = vstv %s1521
        %v1543 = vadd.f32 %v1542, 0.0
        %1544 = vst [vmem:[%s286] sm:$0xff] %v1543
        %v1545 = vstv %s1541
        %v1546 = vadd.f32 %v1545, 0.0
        %1547 = vst [vmem:[%s293] sm:$0xff] %v1546
        %s1548 = sand.u32 %s131, 1
        %s1549 = scalar_lea.sflag [#allocation4], %s1548
        %s1550 = sand.u32 %s131, 1
        %s1551 = smul.addr %s1550, 8
        %s1552 = scalar_lea.vmem [#allocation7], %s1551
        %s1553 = sand.u32 %s157, 1
        %s1554 = scalar_lea.sflag [#allocation9], %s1553
        %s1555 = sand.u32 %s157, 1
        %s1556 = smul.addr %s1555, 8
        %s1557 = scalar_lea.vmem [#allocation8], %s1556
        // Predicated region
        $region45: #{tpu_custom_call.1} parent=35 // pred_check
          %p1558 = pneg %p141
        $region46: #{tpu_custom_call.1} parent=35 // pred_check_branch
          %1560 = sbr.rel (%p1558) target = $region48
        $region47: #{tpu_custom_call.1} parent=35 // pred_region
          %s1562 = ssub.s32 128, 128
          %1563 = vsyncadd %s1549, %s1562
          %s1564 = smul.addr %s29, 128
          %s1565 = scalar_lea.hbm %s4, %s1564
          %s1567 = sshll.u32 %s1552, 4
          %s1568 = int_to_ptr.vmem [resolvable:$true] %s1567
          %1570 = dma.vmem_to_hbm [thread:$0]  %s1568, 128, %s1565, %s1549
        $region48: #{tpu_custom_call.1} parent=35 // pred_fallthru
          _
        // Predicated region
        $region49: #{tpu_custom_call.1} parent=35 // pred_check
          %p1571 = pneg %p167
        $region50: #{tpu_custom_call.1} parent=35 // pred_check_branch
          %1573 = sbr.rel (%p1571) target = $region52
        $region51: #{tpu_custom_call.1} parent=35 // pred_region
          %s1575 = ssub.s32 128, 128
          %1576 = vsyncadd %s1554, %s1575
          %s1577 = smul.addr %s29, 128
          %s1578 = scalar_lea.hbm %s5, %s1577
          %s1580 = sshll.u32 %s1557, 4
          %s1581 = int_to_ptr.vmem [resolvable:$true] %s1580
          %1583 = dma.vmem_to_hbm [thread:$0]  %s1581, 128, %s1578, %s1554
        $region52: #{tpu_custom_call.1} parent=35 // pred_fallthru
          _
      $region36: #{tpu_custom_call.1} parent=5 // pred_fallthru
        _
      %p1584 = scmp.le.s32.totalorder 2, %s24
      // Predicated region
      $region53: #{tpu_custom_call.1} parent=5 // pred_check
        %p1585 = pneg %p1584
      $region54: #{tpu_custom_call.1} parent=5 // pred_check_branch
        %1587 = sbr.rel (%p1585) target = $region56
      $region55: #{tpu_custom_call.1} parent=5 // pred_region
        %s1588 = ssub.s32 %s24, 2
        // Predicated region
        $region57: #{tpu_custom_call.1} parent=55 // pred_check
          %p1589 = pneg %p147
        $region58: #{tpu_custom_call.1} parent=55 // pred_check_branch
          %1591 = sbr.rel (%p1589) target = $region60
        $region59: #{tpu_custom_call.1} parent=55 // pred_region
          %s1592 = sand.u32 %s132, 1
          %s1593 = scalar_lea.sflag [#allocation4], %s1592
          %s1594 = sand.u32 %s132, 1
          %s1595 = smul.addr %s1594, 8
          %s1596 = scalar_lea.vmem [#allocation7], %s1595
          %1597 = dma.done %s1593, 128
        $region60: #{tpu_custom_call.1} parent=55 // pred_fallthru
          _
        // Predicated region
        $region61: #{tpu_custom_call.1} parent=55 // pred_check
          %p1598 = pneg %p173
        $region62: #{tpu_custom_call.1} parent=55 // pred_check_branch
          %1600 = sbr.rel (%p1598) target = $region64
        $region63: #{tpu_custom_call.1} parent=55 // pred_region
          %s1601 = sand.u32 %s158, 1
          %s1602 = scalar_lea.sflag [#allocation9], %s1601
          %s1603 = sand.u32 %s158, 1
          %s1604 = smul.addr %s1603, 8
          %s1605 = scalar_lea.vmem [#allocation8], %s1604
          %1606 = dma.done %s1602, 128
        $region64: #{tpu_custom_call.1} parent=55 // pred_fallthru
          _
      $region56: #{tpu_custom_call.1} parent=5 // pred_fallthru
        _
    $region6: #{tpu_custom_call.1} parent=1 // loop_footer
      %s28 = sadd.s32 1, %s24
    $region7: #{tpu_custom_call.1} parent=1 // loop_footer_branch
      %23 = sbr.rel target = $region3
    $region8: #{tpu_custom_call.1} parent=1 // loop_exit
      _
    %1607 = vsyncpa [#allocation3], 1
    %s1608 = scalar_lea.sflag [#allocation3], 1
    %1609 = vsyncpa %s1608, 1
    %1610 = vsyncpa [#allocation6], 1
    %s1611 = scalar_lea.sflag [#allocation6], 1
    %1612 = vsyncpa %s1611, 1
    %1613 = vsyncpa [#allocation4], 1
    %s1614 = scalar_lea.sflag [#allocation4], 1
    %1615 = vsyncpa %s1614, 1
    %1616 = vsyncpa [#allocation9], 1
    %s1617 = scalar_lea.sflag [#allocation9], 1
    %1618 = vsyncpa %s1617, 1

</llo_original>
